<compile_context>
chip_gen: v7x
topology: tpu7x:2x2x1
jax: 0.10.0
libtpu: 0.0.40
codegen_flags: <defaults>
</compile_context>

<pallas_src>
import functools

import jax
import jax.numpy as jnp
from jax.experimental import pallas as pl
from jax.experimental.pallas import tpu as pltpu


# ---------------------------------------------------------------------------
# Recurrence kernel.  grid = (direction, time_block)
#   direction axis ("parallel"): 0 = forward, 1 = backward
#   time axis ("arbitrary"):     sequential, carries (h, c) in VMEM scratch
# ---------------------------------------------------------------------------
def _bilstm_kernel(gates_ref, whh_ref, lens_ref, out_ref, h_s, c_s, *, unroll):
    d = pl.program_id(0)                       # 0 = fwd, 1 = bwd
    tb = pl.program_id(1)                      # time-block index
    t_block, _, gdim = gates_ref.shape         # (Tt, B, 4H), bf16
    hidden = gdim // 4
    t_pad = pl.num_programs(1) * t_block

    @pl.when(tb == 0)
    def _():                                   # start of each direction's sweep
        h_s[...] = jnp.zeros_like(h_s)
        c_s[...] = jnp.zeros_like(c_s)

    whh = whh_ref[...]                         # (H, 4H) bf16, resident per direction
    lens = lens_ref[...]                       # (B, 1)  int32, resident

    # Affine index parameters (no per-step direction selects):
    #   in-block offset:  li = li0 + sgn * s
    #   original time:    te = te0 + sgn * s
    sgn = 1 - 2 * d                            # +1 fwd, -1 bwd
    li0 = d * (t_block - 1)
    te0 = sgn * (tb * t_block) + d * (t_pad - 1)

    def step(s, carry):
        h, c = carry
        li = li0 + sgn * s
        te = te0 + sgn * s

        gx = gates_ref[pl.ds(li, 1)][0].astype(jnp.float32)   # (B, 4H) precomputed x@Wih+b
        gates = gx + jnp.dot(h.astype(jnp.bfloat16), whh,
                             preferred_element_type=jnp.float32)

        i = jax.nn.sigmoid(gates[:, 0 * hidden:1 * hidden])
        f = jax.nn.sigmoid(gates[:, 1 * hidden:2 * hidden])
        g = jnp.tanh(gates[:, 2 * hidden:3 * hidden])
        o = jax.nn.sigmoid(gates[:, 3 * hidden:4 * hidden])
        c_new = f * c + i * g
        h_new = o * jnp.tanh(c_new)

        valid = te < lens                      # (B, 1) packed-sequence mask
        out_ref[pl.ds(li, 1)] = jnp.where(valid, h_new, 0.0)[None]   # pad -> 0
        h = jnp.where(valid, h_new, h)         # freeze state past each length
        c = jnp.where(valid, c_new, c)
        return h, c

    h, c = jax.lax.fori_loop(0, t_block, step, (h_s[...], c_s[...]), unroll=unroll)
    h_s[...] = h
    c_s[...] = c


# ---------------------------------------------------------------------------
# Wrapper == PyTorch LSTM.forward(vec_seq, len_seq)
# ---------------------------------------------------------------------------
def bidirectional_lstm(vec_seq, len_seq, params, *, t_block=8, unroll=True):
    """vec_seq: (B, T, E) padded batch-first; len_seq: (B,) int.
    Returns (B, T, 2H) float32 with zeros at padded positions."""
    B, T, E = vec_seq.shape
    H = params["whh_f"].shape[1]

    # pad batch to a sublane multiple of 8; padded rows get length 0 -> zeros
    Bp = ((B + 7) // 8) * 8
    if Bp != B:
        vec_seq = jnp.pad(vec_seq, ((0, Bp - B), (0, 0), (0, 0)))
        len_seq = jnp.pad(len_seq, ((0, Bp - B),))

    n_tb = pl.cdiv(T, t_block)
    t_pad = n_tb * t_block

    # ----- hoisted input projection: one big XLA GEMM over all timesteps -----
    x = jnp.transpose(vec_seq, (1, 0, 2))                        # (T, Bp, E)
    wih = jnp.stack([params["wih_f"], params["wih_b"]], 0)       # (2, 4H, E)
    bias = jnp.stack([params["bih_f"] + params["bhh_f"],
                      params["bih_b"] + params["bhh_b"]], 0)     # (2, 4H)
    gates_x = jnp.einsum("tbe,dge->dtbg",
                         x.astype(jnp.bfloat16), wih.astype(jnp.bfloat16),
                         preferred_element_type=jnp.float32)
    gates_x = gates_x + bias[:, None, None, :]                   # (2, T, Bp, 4H)
    gates_x = gates_x.astype(jnp.bfloat16)                       # halve HBM stream
    gates_x = jnp.pad(gates_x, ((0, 0), (0, t_pad - T), (0, 0), (0, 0)))

    whh = jnp.stack([params["whh_f"].T, params["whh_b"].T], 0)   # (2, H, 4H)
    whh = whh.astype(jnp.bfloat16)
    lens = len_seq.reshape(Bp, 1).astype(jnp.int32)

    # forward walks time blocks up, backward walks them down (index_map only)
    def t_idx(d, tb):
        return (1 - d) * tb + d * (n_tb - 1 - tb)

    def t_map(d, tb):
        return (d, t_idx(d, tb), 0, 0)

    # Lane-dense output when the per-gate width allows it: fold direction into
    # the last dim -> full-width stores + cheaper wrapper transpose.
    lane_dense = (H % 128 == 0)
    if lane_dense:
        out_shape = jax.ShapeDtypeStruct((t_pad, Bp, 2 * H), jnp.float32)
        out_spec = pl.BlockSpec((t_block, Bp, H),
                                lambda d, tb: (t_idx(d, tb), 0, d))
    else:
        out_shape = jax.ShapeDtypeStruct((2, t_pad, Bp, H), jnp.float32)
        out_spec = pl.BlockSpec((None, t_block, Bp, H), t_map)

    # explicit scoped-VMEM limit sized from the block footprint (with headroom)
    need = (2 * (t_block * Bp * 4 * H * 2)      # gates, bf16, double-buffered
            + 2 * (H * 4 * H * 2)               # Whh, bf16
            + 2 * (t_block * Bp * H * 4)        # output block, f32
            + 2 * (Bp * H * 4)                  # h/c scratch
            + (1 << 20))
    vmem_limit = int(min(max(2 * need, 32 << 20), 96 << 20))

    grid_spec = pltpu.PrefetchScalarGridSpec(
        num_scalar_prefetch=0,
        grid=(2, n_tb),
        in_specs=[
            pl.BlockSpec((None, t_block, Bp, 4 * H), t_map),           # gates_x bf16
            pl.BlockSpec((None, H, 4 * H), lambda d, tb: (d, 0, 0)),   # Whh bf16
            pl.BlockSpec((Bp, 1), lambda d, tb: (0, 0)),               # lengths
        ],
        out_specs=out_spec,
        scratch_shapes=[pltpu.VMEM((Bp, H), jnp.float32),              # h state
                        pltpu.VMEM((Bp, H), jnp.float32)],             # c state
    )

    out = pl.pallas_call(
        functools.partial(_bilstm_kernel, unroll=unroll),
        out_shape=out_shape,
        grid_spec=grid_spec,
        compiler_params=pltpu.CompilerParams(
            # on v7x use pltpu.CORE_PARALLEL for axis 0 to split the two
            # directions across the two TensorCores
            dimension_semantics=("parallel", "arbitrary"),
            vmem_limit_bytes=vmem_limit),
    )(gates_x, whh, lens)

    if lane_dense:
        out = out[:T, :B]                                   # (T, B, 2H)
        return jnp.transpose(out, (1, 0, 2))                # batch-first
    out = out[:, :T, :B]                                    # (2, T, B, H)
    return jnp.transpose(out, (2, 1, 0, 3)).reshape(B, T, 2 * H)


# ---------------------------------------------------------------------------
# Pure-JAX f32 reference (PyTorch packed-sequence bidirectional LSTM semantics)
# ---------------------------------------------------------------------------
def _lstm_reference(vec_seq, len_seq, params):
    B, T, E = vec_seq.shape
    H = params["whh_f"].shape[1]

    def run(direction):
        wih = params[f"wih_{direction}"]
        whh = params[f"whh_{direction}"]
        b = params[f"bih_{direction}"] + params[f"bhh_{direction}"]
        h = jnp.zeros((B, H), jnp.float32)
        c = jnp.zeros((B, H), jnp.float32)
        outs = [None] * T
        ts = range(T) if direction == "f" else range(T - 1, -1, -1)
        for t in ts:
            g = vec_seq[:, t] @ wih.T + h @ whh.T + b
            i = jax.nn.sigmoid(g[:, :H])
            f = jax.nn.sigmoid(g[:, H:2 * H])
            gg = jnp.tanh(g[:, 2 * H:3 * H])
            o = jax.nn.sigmoid(g[:, 3 * H:])
            c_new = f * c + i * gg
            h_new = o * jnp.tanh(c_new)
            valid = (t < len_seq)[:, None]
            outs[t] = jnp.where(valid, h_new, 0.0)
            h = jnp.where(valid, h_new, h)
            c = jnp.where(valid, c_new, c)
        return jnp.stack(outs, axis=1)                       # (B, T, H)

    return jnp.concatenate([run("f"), run("b")], axis=-1)   # (B, T, 2H)


if __name__ == "__main__":
    key = jax.random.PRNGKey(0)

    def make_params(E, H, k):
        ks = jax.random.split(k, 8)
        s = float(H) ** -0.5
        u = lambda kk, shape: jax.random.uniform(kk, shape, jnp.float32, -s, s)
        return dict(
            wih_f=u(ks[0], (4 * H, E)), whh_f=u(ks[1], (4 * H, H)),
            bih_f=u(ks[2], (4 * H,)),   bhh_f=u(ks[3], (4 * H,)),
            wih_b=u(ks[4], (4 * H, E)), whh_b=u(ks[5], (4 * H, H)),
            bih_b=u(ks[6], (4 * H,)),   bhh_b=u(ks[7], (4 * H,)),
        )

    def check(B, T, E, H, lens_list, k):
        kp, kx = jax.random.split(k)
        params = make_params(E, H, kp)
        vec_seq = jax.random.normal(kx, (B, T, E), jnp.float32)   # padded, batch_first
        len_seq = jnp.array(lens_list, jnp.int32)

        out = jax.block_until_ready(bidirectional_lstm(vec_seq, len_seq, params))
        assert out.shape == (B, T, 2 * H)
        assert bool(jnp.all(jnp.isfinite(out)))

        # pad_packed_sequence semantics: positions past each length exactly zero
        pad_mask = jnp.arange(T)[None, :, None] >= len_seq[:, None, None]
        assert bool(jnp.all(jnp.where(pad_mask, out, 0.0) == 0.0))

        ref = _lstm_reference(vec_seq, len_seq, params)
        err = float(jnp.max(jnp.abs(out - ref)))
        assert err < 0.1, f"max abs error vs f32 reference too large: {err}"

    # small-H case (exercises the safe (2,T,B,H) output layout + batch padding)
    check(4, 12, 32, 32, [12, 9, 5, 11], jax.random.fold_in(key, 0))
    # H multiple of 128 (exercises the lane-dense folded output layout)
    check(3, 11, 24, 128, [11, 7, 4], jax.random.fold_in(key, 1))

    print("KERNEL_OK")
</pallas_src>

<mosaic_0001>
module attributes {stable_mosaic.version = 11 : i64} {
  func.func @_bilstm_kernel(%arg0: i32, %arg1: i32, %arg2: memref<1x8x8x128xbf16, #tpu.memory_space<vmem>>, %arg3: memref<1x32x128xbf16, #tpu.memory_space<vmem>>, %arg4: memref<8x1xi32, #tpu.memory_space<vmem>>, %arg5: memref<1x8x8x32xf32, #tpu.memory_space<vmem>>, %arg6: memref<8x32xf32, #tpu.memory_space<vmem>>, %arg7: memref<8x32xf32, #tpu.memory_space<vmem>>) attributes {dimension_semantics = [#tpu.dimension_semantics<parallel>, #tpu.dimension_semantics<arbitrary>], iteration_bounds = array<i64: 2, 2>, scalar_prefetch = 0 : i64, scratch_operands = 2 : i64, tpu.core_type = #tpu.core_type<tc>, window_params = [{transform_indices = @transform_0, window_bounds = array<i64: 1, 8, 8, 128>}, {transform_indices = @transform_1, window_bounds = array<i64: 1, 32, 128>}, {pipeline_mode = #tpu.pipeline_mode<synchronous>, transform_indices = @transform_2, window_bounds = array<i64: 8, 1>}, {transform_indices = @transform_3, window_bounds = array<i64: 1, 8, 8, 32>}]} {
    %c0_i32 = arith.constant 0 : i32
    %0 = arith.cmpi eq, %arg1, %c0_i32 : i32
    %1 = arith.extui %0 : i1 to i32
    %c0_i32_0 = arith.constant 0 : i32
    %2 = arith.cmpi ne, %1, %c0_i32_0 : i32
    scf.if %2 {
      %cst_105 = arith.constant 0.000000e+00 : f32
      %449 = vector.broadcast %cst_105 : f32 to vector<8x32xf32>
      %c0_106 = arith.constant 0 : index
      %c0_107 = arith.constant 0 : index
      %450 = vector.load %arg6[%c0_106, %c0_107] : memref<8x32xf32, #tpu.memory_space<vmem>>, vector<8x32xf32>
      tpu.vector_store %arg6[%c0_106, %c0_107], %449 {strides = array<i32>} : memref<8x32xf32, #tpu.memory_space<vmem>>, vector<8x32xf32>,
      %cst_108 = arith.constant 0.000000e+00 : f32
      %451 = vector.broadcast %cst_108 : f32 to vector<8x32xf32>
      %c0_109 = arith.constant 0 : index
      %c0_110 = arith.constant 0 : index
      %452 = vector.load %arg7[%c0_109, %c0_110] : memref<8x32xf32, #tpu.memory_space<vmem>>, vector<8x32xf32>
      tpu.vector_store %arg7[%c0_109, %c0_110], %451 {strides = array<i32>} : memref<8x32xf32, #tpu.memory_space<vmem>>, vector<8x32xf32>,
    } else {
    }
    %c0 = arith.constant 0 : index
    %c0_1 = arith.constant 0 : index
    %c0_2 = arith.constant 0 : index
    %3 = vector.load %arg3[%c0, %c0_1, %c0_2] : memref<1x32x128xbf16, #tpu.memory_space<vmem>>, vector<1x32x128xbf16>
    %4 = vector.shape_cast %3 : vector<1x32x128xbf16> to vector<32x128xbf16>
    %c0_3 = arith.constant 0 : index
    %c0_4 = arith.constant 0 : index
    %5 = vector.load %arg4[%c0_3, %c0_4] : memref<8x1xi32, #tpu.memory_space<vmem>>, vector<8x1xi32>
    %c2_i32 = arith.constant 2 : i32
    %6 = arith.muli %c2_i32, %arg0 : i32
    %c1_i32 = arith.constant 1 : i32
    %7 = arith.subi %c1_i32, %6 : i32
    %c7_i32 = arith.constant 7 : i32
    %8 = arith.muli %arg0, %c7_i32 : i32
    %c8_i32 = arith.constant 8 : i32
    %9 = arith.muli %arg1, %c8_i32 : i32
    %10 = arith.muli %7, %9 : i32
    %c15_i32 = arith.constant 15 : i32
    %11 = arith.muli %arg0, %c15_i32 : i32
    %12 = arith.addi %10, %11 : i32
    %c0_5 = arith.constant 0 : index
    %c0_6 = arith.constant 0 : index
    %13 = vector.load %arg6[%c0_5, %c0_6] : memref<8x32xf32, #tpu.memory_space<vmem>>, vector<8x32xf32>
    %c0_7 = arith.constant 0 : index
    %c0_8 = arith.constant 0 : index
    %14 = vector.load %arg7[%c0_7, %c0_8] : memref<8x32xf32, #tpu.memory_space<vmem>>, vector<8x32xf32>
    %c0_i32_9 = arith.constant 0 : i32
    %15 = arith.muli %7, %c0_i32_9 : i32
    %16 = arith.addi %8, %15 : i32
    %17 = arith.muli %7, %c0_i32_9 : i32
    %18 = arith.addi %12, %17 : i32
    %c0_10 = arith.constant 0 : index
    %19 = arith.index_cast %16 : i32 to index
    %c0_11 = arith.constant 0 : index
    %c0_12 = arith.constant 0 : index
    %20 = vector.load %arg2[%c0_10, %19, %c0_11, %c0_12] : memref<1x8x8x128xbf16, #tpu.memory_space<vmem>>, vector<1x1x8x128xbf16>
    %21 = vector.shape_cast %20 : vector<1x1x8x128xbf16> to vector<1x8x128xbf16>
    %22 = vector.shape_cast %21 : vector<1x8x128xbf16> to vector<8x128xbf16>
    %23 = arith.extf %22 : vector<8x128xbf16> to vector<8x128xf32>
    %24 = arith.truncf %13 : vector<8x32xf32> to vector<8x32xbf16>
    %cst = arith.constant dense<0.000000e+00> : vector<8x128xf32>
    %25 = tpu.matmul %24, %4, %cst {dimension_numbers = #tpu.dot_dimension_numbers<[1], [0], [0], [1], [0, 0, 1, 1], [], []>} : vector<8x32xbf16>, vector<32x128xbf16>, vector<8x128xf32> -> vector<8x128xf32>
    %26 = arith.addf %23, %25 : vector<8x128xf32>
    %27 = vector.extract_strided_slice %26 {offsets = [0, 0], sizes = [8, 32], strides = [1, 1]} : vector<8x128xf32> to vector<8x32xf32>
    %28 = arith.negf %27 : vector<8x32xf32>
    %29 = math.exp %28 : vector<8x32xf32>
    %cst_13 = arith.constant 1.000000e+00 : f32
    %30 = vector.broadcast %cst_13 : f32 to vector<8x32xf32>
    %31 = arith.addf %30, %29 : vector<8x32xf32>
    %32 = arith.divf %30, %31 : vector<8x32xf32>
    %33 = vector.extract_strided_slice %26 {offsets = [0, 32], sizes = [8, 32], strides = [1, 1]} : vector<8x128xf32> to vector<8x32xf32>
    %34 = arith.negf %33 : vector<8x32xf32>
    %35 = math.exp %34 : vector<8x32xf32>
    %cst_14 = arith.constant 1.000000e+00 : f32
    %36 = vector.broadcast %cst_14 : f32 to vector<8x32xf32>
    %37 = arith.addf %36, %35 : vector<8x32xf32>
    %38 = arith.divf %36, %37 : vector<8x32xf32>
    %39 = vector.extract_strided_slice %26 {offsets = [0, 64], sizes = [8, 32], strides = [1, 1]} : vector<8x128xf32> to vector<8x32xf32>
    %40 = math.tanh %39 : vector<8x32xf32>
    %41 = vector.extract_strided_slice %26 {offsets = [0, 96], sizes = [8, 32], strides = [1, 1]} : vector<8x128xf32> to vector<8x32xf32>
    %42 = arith.negf %41 : vector<8x32xf32>
    %43 = math.exp %42 : vector<8x32xf32>
    %cst_15 = arith.constant 1.000000e+00 : f32
    %44 = vector.broadcast %cst_15 : f32 to vector<8x32xf32>
    %45 = arith.addf %44, %43 : vector<8x32xf32>
    %46 = arith.divf %44, %45 : vector<8x32xf32>
    %47 = arith.mulf %38, %14 : vector<8x32xf32>
    %48 = arith.mulf %32, %40 : vector<8x32xf32>
    %49 = arith.addf %47, %48 : vector<8x32xf32>
    %50 = math.tanh %49 : vector<8x32xf32>
    %51 = arith.mulf %46, %50 : vector<8x32xf32>
    %52 = vector.broadcast %18 : i32 to vector<8x1xi32>
    %53 = arith.cmpi slt, %52, %5 : vector<8x1xi32>
    %cst_16 = arith.constant 0.000000e+00 : f32
    %54 = vector.shape_cast %53 : vector<8x1xi1> to vector<8x1xi1>
    %55 = vector.broadcast %54 : vector<8x1xi1> to vector<8x32xi1>
    %56 = vector.broadcast %cst_16 : f32 to vector<8x32xf32>
    %57 = arith.select %55, %51, %56 : vector<8x32xi1>, vector<8x32xf32>
    %58 = vector.shape_cast %57 : vector<8x32xf32> to vector<1x8x32xf32>
    %c0_17 = arith.constant 0 : index
    %59 = arith.index_cast %16 : i32 to index
    %c0_18 = arith.constant 0 : index
    %c0_19 = arith.constant 0 : index
    %60 = vector.load %arg5[%c0_17, %59, %c0_18, %c0_19] : memref<1x8x8x32xf32, #tpu.memory_space<vmem>>, vector<1x1x8x32xf32>
    %61 = vector.shape_cast %60 : vector<1x1x8x32xf32> to vector<1x8x32xf32>
    %62 = vector.shape_cast %58 : vector<1x8x32xf32> to vector<1x1x8x32xf32>
    tpu.vector_store %arg5[%c0_17, %59, %c0_18, %c0_19], %62 {strides = array<i32>} : memref<1x8x8x32xf32, #tpu.memory_space<vmem>>, vector<1x1x8x32xf32>,
    %63 = vector.shape_cast %53 : vector<8x1xi1> to vector<8x1xi1>
    %64 = vector.broadcast %63 : vector<8x1xi1> to vector<8x32xi1>
    %65 = arith.select %64, %51, %13 : vector<8x32xi1>, vector<8x32xf32>
    %66 = vector.shape_cast %53 : vector<8x1xi1> to vector<8x1xi1>
    %67 = vector.broadcast %66 : vector<8x1xi1> to vector<8x32xi1>
    %68 = arith.select %67, %49, %14 : vector<8x32xi1>, vector<8x32xf32>
    %c1_i32_20 = arith.constant 1 : i32
    %69 = arith.muli %7, %c1_i32_20 : i32
    %70 = arith.addi %8, %69 : i32
    %71 = arith.muli %7, %c1_i32_20 : i32
    %72 = arith.addi %12, %71 : i32
    %c0_21 = arith.constant 0 : index
    %73 = arith.index_cast %70 : i32 to index
    %c0_22 = arith.constant 0 : index
    %c0_23 = arith.constant 0 : index
    %74 = vector.load %arg2[%c0_21, %73, %c0_22, %c0_23] : memref<1x8x8x128xbf16, #tpu.memory_space<vmem>>, vector<1x1x8x128xbf16>
    %75 = vector.shape_cast %74 : vector<1x1x8x128xbf16> to vector<1x8x128xbf16>
    %76 = vector.shape_cast %75 : vector<1x8x128xbf16> to vector<8x128xbf16>
    %77 = arith.extf %76 : vector<8x128xbf16> to vector<8x128xf32>
    %78 = arith.truncf %65 : vector<8x32xf32> to vector<8x32xbf16>
    %cst_24 = arith.constant dense<0.000000e+00> : vector<8x128xf32>
    %79 = tpu.matmul %78, %4, %cst_24 {dimension_numbers = #tpu.dot_dimension_numbers<[1], [0], [0], [1], [0, 0, 1, 1], [], []>} : vector<8x32xbf16>, vector<32x128xbf16>, vector<8x128xf32> -> vector<8x128xf32>
    %80 = arith.addf %77, %79 : vector<8x128xf32>
    %81 = vector.extract_strided_slice %80 {offsets = [0, 0], sizes = [8, 32], strides = [1, 1]} : vector<8x128xf32> to vector<8x32xf32>
    %82 = arith.negf %81 : vector<8x32xf32>
    %83 = math.exp %82 : vector<8x32xf32>
    %cst_25 = arith.constant 1.000000e+00 : f32
    %84 = vector.broadcast %cst_25 : f32 to vector<8x32xf32>
    %85 = arith.addf %84, %83 : vector<8x32xf32>
    %86 = arith.divf %84, %85 : vector<8x32xf32>
    %87 = vector.extract_strided_slice %80 {offsets = [0, 32], sizes = [8, 32], strides = [1, 1]} : vector<8x128xf32> to vector<8x32xf32>
    %88 = arith.negf %87 : vector<8x32xf32>
    %89 = math.exp %88 : vector<8x32xf32>
    %cst_26 = arith.constant 1.000000e+00 : f32
    %90 = vector.broadcast %cst_26 : f32 to vector<8x32xf32>
    %91 = arith.addf %90, %89 : vector<8x32xf32>
    %92 = arith.divf %90, %91 : vector<8x32xf32>
    %93 = vector.extract_strided_slice %80 {offsets = [0, 64], sizes = [8, 32], strides = [1, 1]} : vector<8x128xf32> to vector<8x32xf32>
    %94 = math.tanh %93 : vector<8x32xf32>
    %95 = vector.extract_strided_slice %80 {offsets = [0, 96], sizes = [8, 32], strides = [1, 1]} : vector<8x128xf32> to vector<8x32xf32>
    %96 = arith.negf %95 : vector<8x32xf32>
    %97 = math.exp %96 : vector<8x32xf32>
    %cst_27 = arith.constant 1.000000e+00 : f32
    %98 = vector.broadcast %cst_27 : f32 to vector<8x32xf32>
    %99 = arith.addf %98, %97 : vector<8x32xf32>
    %100 = arith.divf %98, %99 : vector<8x32xf32>
    %101 = arith.mulf %92, %68 : vector<8x32xf32>
    %102 = arith.mulf %86, %94 : vector<8x32xf32>
    %103 = arith.addf %101, %102 : vector<8x32xf32>
    %104 = math.tanh %103 : vector<8x32xf32>
    %105 = arith.mulf %100, %104 : vector<8x32xf32>
    %106 = vector.broadcast %72 : i32 to vector<8x1xi32>
    %107 = arith.cmpi slt, %106, %5 : vector<8x1xi32>
    %cst_28 = arith.constant 0.000000e+00 : f32
    %108 = vector.shape_cast %107 : vector<8x1xi1> to vector<8x1xi1>
    %109 = vector.broadcast %108 : vector<8x1xi1> to vector<8x32xi1>
    %110 = vector.broadcast %cst_28 : f32 to vector<8x32xf32>
    %111 = arith.select %109, %105, %110 : vector<8x32xi1>, vector<8x32xf32>
    %112 = vector.shape_cast %111 : vector<8x32xf32> to vector<1x8x32xf32>
    %c0_29 = arith.constant 0 : index
    %113 = arith.index_cast %70 : i32 to index
    %c0_30 = arith.constant 0 : index
    %c0_31 = arith.constant 0 : index
    %114 = vector.load %arg5[%c0_29, %113, %c0_30, %c0_31] : memref<1x8x8x32xf32, #tpu.memory_space<vmem>>, vector<1x1x8x32xf32>
    %115 = vector.shape_cast %114 : vector<1x1x8x32xf32> to vector<1x8x32xf32>
    %116 = vector.shape_cast %112 : vector<1x8x32xf32> to vector<1x1x8x32xf32>
    tpu.vector_store %arg5[%c0_29, %113, %c0_30, %c0_31], %116 {strides = array<i32>} : memref<1x8x8x32xf32, #tpu.memory_space<vmem>>, vector<1x1x8x32xf32>,
    %117 = vector.shape_cast %107 : vector<8x1xi1> to vector<8x1xi1>
    %118 = vector.broadcast %117 : vector<8x1xi1> to vector<8x32xi1>
    %119 = arith.select %118, %105, %65 : vector<8x32xi1>, vector<8x32xf32>
    %120 = vector.shape_cast %107 : vector<8x1xi1> to vector<8x1xi1>
    %121 = vector.broadcast %120 : vector<8x1xi1> to vector<8x32xi1>
    %122 = arith.select %121, %103, %68 : vector<8x32xi1>, vector<8x32xf32>
    %c2_i32_32 = arith.constant 2 : i32
    %123 = arith.muli %7, %c2_i32_32 : i32
    %124 = arith.addi %8, %123 : i32
    %125 = arith.muli %7, %c2_i32_32 : i32
    %126 = arith.addi %12, %125 : i32
    %c0_33 = arith.constant 0 : index
    %127 = arith.index_cast %124 : i32 to index
    %c0_34 = arith.constant 0 : index
    %c0_35 = arith.constant 0 : index
    %128 = vector.load %arg2[%c0_33, %127, %c0_34, %c0_35] : memref<1x8x8x128xbf16, #tpu.memory_space<vmem>>, vector<1x1x8x128xbf16>
    %129 = vector.shape_cast %128 : vector<1x1x8x128xbf16> to vector<1x8x128xbf16>
    %130 = vector.shape_cast %129 : vector<1x8x128xbf16> to vector<8x128xbf16>
    %131 = arith.extf %130 : vector<8x128xbf16> to vector<8x128xf32>
    %132 = arith.truncf %119 : vector<8x32xf32> to vector<8x32xbf16>
    %cst_36 = arith.constant dense<0.000000e+00> : vector<8x128xf32>
    %133 = tpu.matmul %132, %4, %cst_36 {dimension_numbers = #tpu.dot_dimension_numbers<[1], [0], [0], [1], [0, 0, 1, 1], [], []>} : vector<8x32xbf16>, vector<32x128xbf16>, vector<8x128xf32> -> vector<8x128xf32>
    %134 = arith.addf %131, %133 : vector<8x128xf32>
    %135 = vector.extract_strided_slice %134 {offsets = [0, 0], sizes = [8, 32], strides = [1, 1]} : vector<8x128xf32> to vector<8x32xf32>
    %136 = arith.negf %135 : vector<8x32xf32>
    %137 = math.exp %136 : vector<8x32xf32>
    %cst_37 = arith.constant 1.000000e+00 : f32
    %138 = vector.broadcast %cst_37 : f32 to vector<8x32xf32>
    %139 = arith.addf %138, %137 : vector<8x32xf32>
    %140 = arith.divf %138, %139 : vector<8x32xf32>
    %141 = vector.extract_strided_slice %134 {offsets = [0, 32], sizes = [8, 32], strides = [1, 1]} : vector<8x128xf32> to vector<8x32xf32>
    %142 = arith.negf %141 : vector<8x32xf32>
    %143 = math.exp %142 : vector<8x32xf32>
    %cst_38 = arith.constant 1.000000e+00 : f32
    %144 = vector.broadcast %cst_38 : f32 to vector<8x32xf32>
    %145 = arith.addf %144, %143 : vector<8x32xf32>
    %146 = arith.divf %144, %145 : vector<8x32xf32>
    %147 = vector.extract_strided_slice %134 {offsets = [0, 64], sizes = [8, 32], strides = [1, 1]} : vector<8x128xf32> to vector<8x32xf32>
    %148 = math.tanh %147 : vector<8x32xf32>
    %149 = vector.extract_strided_slice %134 {offsets = [0, 96], sizes = [8, 32], strides = [1, 1]} : vector<8x128xf32> to vector<8x32xf32>
    %150 = arith.negf %149 : vector<8x32xf32>
    %151 = math.exp %150 : vector<8x32xf32>
    %cst_39 = arith.constant 1.000000e+00 : f32
    %152 = vector.broadcast %cst_39 : f32 to vector<8x32xf32>
    %153 = arith.addf %152, %151 : vector<8x32xf32>
    %154 = arith.divf %152, %153 : vector<8x32xf32>
    %155 = arith.mulf %146, %122 : vector<8x32xf32>
    %156 = arith.mulf %140, %148 : vector<8x32xf32>
    %157 = arith.addf %155, %156 : vector<8x32xf32>
    %158 = math.tanh %157 : vector<8x32xf32>
    %159 = arith.mulf %154, %158 : vector<8x32xf32>
    %160 = vector.broadcast %126 : i32 to vector<8x1xi32>
    %161 = arith.cmpi slt, %160, %5 : vector<8x1xi32>
    %cst_40 = arith.constant 0.000000e+00 : f32
    %162 = vector.shape_cast %161 : vector<8x1xi1> to vector<8x1xi1>
    %163 = vector.broadcast %162 : vector<8x1xi1> to vector<8x32xi1>
    %164 = vector.broadcast %cst_40 : f32 to vector<8x32xf32>
    %165 = arith.select %163, %159, %164 : vector<8x32xi1>, vector<8x32xf32>
    %166 = vector.shape_cast %165 : vector<8x32xf32> to vector<1x8x32xf32>
    %c0_41 = arith.constant 0 : index
    %167 = arith.index_cast %124 : i32 to index
    %c0_42 = arith.constant 0 : index
    %c0_43 = arith.constant 0 : index
    %168 = vector.load %arg5[%c0_41, %167, %c0_42, %c0_43] : memref<1x8x8x32xf32, #tpu.memory_space<vmem>>, vector<1x1x8x32xf32>
    %169 = vector.shape_cast %168 : vector<1x1x8x32xf32> to vector<1x8x32xf32>
    %170 = vector.shape_cast %166 : vector<1x8x32xf32> to vector<1x1x8x32xf32>
    tpu.vector_store %arg5[%c0_41, %167, %c0_42, %c0_43], %170 {strides = array<i32>} : memref<1x8x8x32xf32, #tpu.memory_space<vmem>>, vector<1x1x8x32xf32>,
    %171 = vector.shape_cast %161 : vector<8x1xi1> to vector<8x1xi1>
    %172 = vector.broadcast %171 : vector<8x1xi1> to vector<8x32xi1>
    %173 = arith.select %172, %159, %119 : vector<8x32xi1>, vector<8x32xf32>
    %174 = vector.shape_cast %161 : vector<8x1xi1> to vector<8x1xi1>
    %175 = vector.broadcast %174 : vector<8x1xi1> to vector<8x32xi1>
    %176 = arith.select %175, %157, %122 : vector<8x32xi1>, vector<8x32xf32>
    %c3_i32 = arith.constant 3 : i32
    %177 = arith.muli %7, %c3_i32 : i32
    %178 = arith.addi %8, %177 : i32
    %179 = arith.muli %7, %c3_i32 : i32
    %180 = arith.addi %12, %179 : i32
    %c0_44 = arith.constant 0 : index
    %181 = arith.index_cast %178 : i32 to index
    %c0_45 = arith.constant 0 : index
    %c0_46 = arith.constant 0 : index
    %182 = vector.load %arg2[%c0_44, %181, %c0_45, %c0_46] : memref<1x8x8x128xbf16, #tpu.memory_space<vmem>>, vector<1x1x8x128xbf16>
    %183 = vector.shape_cast %182 : vector<1x1x8x128xbf16> to vector<1x8x128xbf16>
    %184 = vector.shape_cast %183 : vector<1x8x128xbf16> to vector<8x128xbf16>
    %185 = arith.extf %184 : vector<8x128xbf16> to vector<8x128xf32>
    %186 = arith.truncf %173 : vector<8x32xf32> to vector<8x32xbf16>
    %cst_47 = arith.constant dense<0.000000e+00> : vector<8x128xf32>
    %187 = tpu.matmul %186, %4, %cst_47 {dimension_numbers = #tpu.dot_dimension_numbers<[1], [0], [0], [1], [0, 0, 1, 1], [], []>} : vector<8x32xbf16>, vector<32x128xbf16>, vector<8x128xf32> -> vector<8x128xf32>
    %188 = arith.addf %185, %187 : vector<8x128xf32>
    %189 = vector.extract_strided_slice %188 {offsets = [0, 0], sizes = [8, 32], strides = [1, 1]} : vector<8x128xf32> to vector<8x32xf32>
    %190 = arith.negf %189 : vector<8x32xf32>
    %191 = math.exp %190 : vector<8x32xf32>
    %cst_48 = arith.constant 1.000000e+00 : f32
    %192 = vector.broadcast %cst_48 : f32 to vector<8x32xf32>
    %193 = arith.addf %192, %191 : vector<8x32xf32>
    %194 = arith.divf %192, %193 : vector<8x32xf32>
    %195 = vector.extract_strided_slice %188 {offsets = [0, 32], sizes = [8, 32], strides = [1, 1]} : vector<8x128xf32> to vector<8x32xf32>
    %196 = arith.negf %195 : vector<8x32xf32>
    %197 = math.exp %196 : vector<8x32xf32>
    %cst_49 = arith.constant 1.000000e+00 : f32
    %198 = vector.broadcast %cst_49 : f32 to vector<8x32xf32>
    %199 = arith.addf %198, %197 : vector<8x32xf32>
    %200 = arith.divf %198, %199 : vector<8x32xf32>
    %201 = vector.extract_strided_slice %188 {offsets = [0, 64], sizes = [8, 32], strides = [1, 1]} : vector<8x128xf32> to vector<8x32xf32>
    %202 = math.tanh %201 : vector<8x32xf32>
    %203 = vector.extract_strided_slice %188 {offsets = [0, 96], sizes = [8, 32], strides = [1, 1]} : vector<8x128xf32> to vector<8x32xf32>
    %204 = arith.negf %203 : vector<8x32xf32>
    %205 = math.exp %204 : vector<8x32xf32>
    %cst_50 = arith.constant 1.000000e+00 : f32
    %206 = vector.broadcast %cst_50 : f32 to vector<8x32xf32>
    %207 = arith.addf %206, %205 : vector<8x32xf32>
    %208 = arith.divf %206, %207 : vector<8x32xf32>
    %209 = arith.mulf %200, %176 : vector<8x32xf32>
    %210 = arith.mulf %194, %202 : vector<8x32xf32>
    %211 = arith.addf %209, %210 : vector<8x32xf32>
    %212 = math.tanh %211 : vector<8x32xf32>
    %213 = arith.mulf %208, %212 : vector<8x32xf32>
    %214 = vector.broadcast %180 : i32 to vector<8x1xi32>
    %215 = arith.cmpi slt, %214, %5 : vector<8x1xi32>
    %cst_51 = arith.constant 0.000000e+00 : f32
    %216 = vector.shape_cast %215 : vector<8x1xi1> to vector<8x1xi1>
    %217 = vector.broadcast %216 : vector<8x1xi1> to vector<8x32xi1>
    %218 = vector.broadcast %cst_51 : f32 to vector<8x32xf32>
    %219 = arith.select %217, %213, %218 : vector<8x32xi1>, vector<8x32xf32>
    %220 = vector.shape_cast %219 : vector<8x32xf32> to vector<1x8x32xf32>
    %c0_52 = arith.constant 0 : index
    %221 = arith.index_cast %178 : i32 to index
    %c0_53 = arith.constant 0 : index
    %c0_54 = arith.constant 0 : index
    %222 = vector.load %arg5[%c0_52, %221, %c0_53, %c0_54] : memref<1x8x8x32xf32, #tpu.memory_space<vmem>>, vector<1x1x8x32xf32>
    %223 = vector.shape_cast %222 : vector<1x1x8x32xf32> to vector<1x8x32xf32>
    %224 = vector.shape_cast %220 : vector<1x8x32xf32> to vector<1x1x8x32xf32>
    tpu.vector_store %arg5[%c0_52, %221, %c0_53, %c0_54], %224 {strides = array<i32>} : memref<1x8x8x32xf32, #tpu.memory_space<vmem>>, vector<1x1x8x32xf32>,
    %225 = vector.shape_cast %215 : vector<8x1xi1> to vector<8x1xi1>
    %226 = vector.broadcast %225 : vector<8x1xi1> to vector<8x32xi1>
    %227 = arith.select %226, %213, %173 : vector<8x32xi1>, vector<8x32xf32>
    %228 = vector.shape_cast %215 : vector<8x1xi1> to vector<8x1xi1>
    %229 = vector.broadcast %228 : vector<8x1xi1> to vector<8x32xi1>
    %230 = arith.select %229, %211, %176 : vector<8x32xi1>, vector<8x32xf32>
    %c4_i32 = arith.constant 4 : i32
    %231 = arith.muli %7, %c4_i32 : i32
    %232 = arith.addi %8, %231 : i32
    %233 = arith.muli %7, %c4_i32 : i32
    %234 = arith.addi %12, %233 : i32
    %c0_55 = arith.constant 0 : index
    %235 = arith.index_cast %232 : i32 to index
    %c0_56 = arith.constant 0 : index
    %c0_57 = arith.constant 0 : index
    %236 = vector.load %arg2[%c0_55, %235, %c0_56, %c0_57] : memref<1x8x8x128xbf16, #tpu.memory_space<vmem>>, vector<1x1x8x128xbf16>
    %237 = vector.shape_cast %236 : vector<1x1x8x128xbf16> to vector<1x8x128xbf16>
    %238 = vector.shape_cast %237 : vector<1x8x128xbf16> to vector<8x128xbf16>
    %239 = arith.extf %238 : vector<8x128xbf16> to vector<8x128xf32>
    %240 = arith.truncf %227 : vector<8x32xf32> to vector<8x32xbf16>
    %cst_58 = arith.constant dense<0.000000e+00> : vector<8x128xf32>
    %241 = tpu.matmul %240, %4, %cst_58 {dimension_numbers = #tpu.dot_dimension_numbers<[1], [0], [0], [1], [0, 0, 1, 1], [], []>} : vector<8x32xbf16>, vector<32x128xbf16>, vector<8x128xf32> -> vector<8x128xf32>
    %242 = arith.addf %239, %241 : vector<8x128xf32>
    %243 = vector.extract_strided_slice %242 {offsets = [0, 0], sizes = [8, 32], strides = [1, 1]} : vector<8x128xf32> to vector<8x32xf32>
    %244 = arith.negf %243 : vector<8x32xf32>
    %245 = math.exp %244 : vector<8x32xf32>
    %cst_59 = arith.constant 1.000000e+00 : f32
    %246 = vector.broadcast %cst_59 : f32 to vector<8x32xf32>
    %247 = arith.addf %246, %245 : vector<8x32xf32>
    %248 = arith.divf %246, %247 : vector<8x32xf32>
    %249 = vector.extract_strided_slice %242 {offsets = [0, 32], sizes = [8, 32], strides = [1, 1]} : vector<8x128xf32> to vector<8x32xf32>
    %250 = arith.negf %249 : vector<8x32xf32>
    %251 = math.exp %250 : vector<8x32xf32>
    %cst_60 = arith.constant 1.000000e+00 : f32
    %252 = vector.broadcast %cst_60 : f32 to vector<8x32xf32>
    %253 = arith.addf %252, %251 : vector<8x32xf32>
    %254 = arith.divf %252, %253 : vector<8x32xf32>
    %255 = vector.extract_strided_slice %242 {offsets = [0, 64], sizes = [8, 32], strides = [1, 1]} : vector<8x128xf32> to vector<8x32xf32>
    %256 = math.tanh %255 : vector<8x32xf32>
    %257 = vector.extract_strided_slice %242 {offsets = [0, 96], sizes = [8, 32], strides = [1, 1]} : vector<8x128xf32> to vector<8x32xf32>
    %258 = arith.negf %257 : vector<8x32xf32>
    %259 = math.exp %258 : vector<8x32xf32>
    %cst_61 = arith.constant 1.000000e+00 : f32
    %260 = vector.broadcast %cst_61 : f32 to vector<8x32xf32>
    %261 = arith.addf %260, %259 : vector<8x32xf32>
    %262 = arith.divf %260, %261 : vector<8x32xf32>
    %263 = arith.mulf %254, %230 : vector<8x32xf32>
    %264 = arith.mulf %248, %256 : vector<8x32xf32>
    %265 = arith.addf %263, %264 : vector<8x32xf32>
    %266 = math.tanh %265 : vector<8x32xf32>
    %267 = arith.mulf %262, %266 : vector<8x32xf32>
    %268 = vector.broadcast %234 : i32 to vector<8x1xi32>
    %269 = arith.cmpi slt, %268, %5 : vector<8x1xi32>
    %cst_62 = arith.constant 0.000000e+00 : f32
    %270 = vector.shape_cast %269 : vector<8x1xi1> to vector<8x1xi1>
    %271 = vector.broadcast %270 : vector<8x1xi1> to vector<8x32xi1>
    %272 = vector.broadcast %cst_62 : f32 to vector<8x32xf32>
    %273 = arith.select %271, %267, %272 : vector<8x32xi1>, vector<8x32xf32>
    %274 = vector.shape_cast %273 : vector<8x32xf32> to vector<1x8x32xf32>
    %c0_63 = arith.constant 0 : index
    %275 = arith.index_cast %232 : i32 to index
    %c0_64 = arith.constant 0 : index
    %c0_65 = arith.constant 0 : index
    %276 = vector.load %arg5[%c0_63, %275, %c0_64, %c0_65] : memref<1x8x8x32xf32, #tpu.memory_space<vmem>>, vector<1x1x8x32xf32>
    %277 = vector.shape_cast %276 : vector<1x1x8x32xf32> to vector<1x8x32xf32>
    %278 = vector.shape_cast %274 : vector<1x8x32xf32> to vector<1x1x8x32xf32>
    tpu.vector_store %arg5[%c0_63, %275, %c0_64, %c0_65], %278 {strides = array<i32>} : memref<1x8x8x32xf32, #tpu.memory_space<vmem>>, vector<1x1x8x32xf32>,
    %279 = vector.shape_cast %269 : vector<8x1xi1> to vector<8x1xi1>
    %280 = vector.broadcast %279 : vector<8x1xi1> to vector<8x32xi1>
    %281 = arith.select %280, %267, %227 : vector<8x32xi1>, vector<8x32xf32>
    %282 = vector.shape_cast %269 : vector<8x1xi1> to vector<8x1xi1>
    %283 = vector.broadcast %282 : vector<8x1xi1> to vector<8x32xi1>
    %284 = arith.select %283, %265, %230 : vector<8x32xi1>, vector<8x32xf32>
    %c5_i32 = arith.constant 5 : i32
    %285 = arith.muli %7, %c5_i32 : i32
    %286 = arith.addi %8, %285 : i32
    %287 = arith.muli %7, %c5_i32 : i32
    %288 = arith.addi %12, %287 : i32
    %c0_66 = arith.constant 0 : index
    %289 = arith.index_cast %286 : i32 to index
    %c0_67 = arith.constant 0 : index
    %c0_68 = arith.constant 0 : index
    %290 = vector.load %arg2[%c0_66, %289, %c0_67, %c0_68] : memref<1x8x8x128xbf16, #tpu.memory_space<vmem>>, vector<1x1x8x128xbf16>
    %291 = vector.shape_cast %290 : vector<1x1x8x128xbf16> to vector<1x8x128xbf16>
    %292 = vector.shape_cast %291 : vector<1x8x128xbf16> to vector<8x128xbf16>
    %293 = arith.extf %292 : vector<8x128xbf16> to vector<8x128xf32>
    %294 = arith.truncf %281 : vector<8x32xf32> to vector<8x32xbf16>
    %cst_69 = arith.constant dense<0.000000e+00> : vector<8x128xf32>
    %295 = tpu.matmul %294, %4, %cst_69 {dimension_numbers = #tpu.dot_dimension_numbers<[1], [0], [0], [1], [0, 0, 1, 1], [], []>} : vector<8x32xbf16>, vector<32x128xbf16>, vector<8x128xf32> -> vector<8x128xf32>
    %296 = arith.addf %293, %295 : vector<8x128xf32>
    %297 = vector.extract_strided_slice %296 {offsets = [0, 0], sizes = [8, 32], strides = [1, 1]} : vector<8x128xf32> to vector<8x32xf32>
    %298 = arith.negf %297 : vector<8x32xf32>
    %299 = math.exp %298 : vector<8x32xf32>
    %cst_70 = arith.constant 1.000000e+00 : f32
    %300 = vector.broadcast %cst_70 : f32 to vector<8x32xf32>
    %301 = arith.addf %300, %299 : vector<8x32xf32>
    %302 = arith.divf %300, %301 : vector<8x32xf32>
    %303 = vector.extract_strided_slice %296 {offsets = [0, 32], sizes = [8, 32], strides = [1, 1]} : vector<8x128xf32> to vector<8x32xf32>
    %304 = arith.negf %303 : vector<8x32xf32>
    %305 = math.exp %304 : vector<8x32xf32>
    %cst_71 = arith.constant 1.000000e+00 : f32
    %306 = vector.broadcast %cst_71 : f32 to vector<8x32xf32>
    %307 = arith.addf %306, %305 : vector<8x32xf32>
    %308 = arith.divf %306, %307 : vector<8x32xf32>
    %309 = vector.extract_strided_slice %296 {offsets = [0, 64], sizes = [8, 32], strides = [1, 1]} : vector<8x128xf32> to vector<8x32xf32>
    %310 = math.tanh %309 : vector<8x32xf32>
    %311 = vector.extract_strided_slice %296 {offsets = [0, 96], sizes = [8, 32], strides = [1, 1]} : vector<8x128xf32> to vector<8x32xf32>
    %312 = arith.negf %311 : vector<8x32xf32>
    %313 = math.exp %312 : vector<8x32xf32>
    %cst_72 = arith.constant 1.000000e+00 : f32
    %314 = vector.broadcast %cst_72 : f32 to vector<8x32xf32>
    %315 = arith.addf %314, %313 : vector<8x32xf32>
    %316 = arith.divf %314, %315 : vector<8x32xf32>
    %317 = arith.mulf %308, %284 : vector<8x32xf32>
    %318 = arith.mulf %302, %310 : vector<8x32xf32>
    %319 = arith.addf %317, %318 : vector<8x32xf32>
    %320 = math.tanh %319 : vector<8x32xf32>
    %321 = arith.mulf %316, %320 : vector<8x32xf32>
    %322 = vector.broadcast %288 : i32 to vector<8x1xi32>
    %323 = arith.cmpi slt, %322, %5 : vector<8x1xi32>
    %cst_73 = arith.constant 0.000000e+00 : f32
    %324 = vector.shape_cast %323 : vector<8x1xi1> to vector<8x1xi1>
    %325 = vector.broadcast %324 : vector<8x1xi1> to vector<8x32xi1>
    %326 = vector.broadcast %cst_73 : f32 to vector<8x32xf32>
    %327 = arith.select %325, %321, %326 : vector<8x32xi1>, vector<8x32xf32>
    %328 = vector.shape_cast %327 : vector<8x32xf32> to vector<1x8x32xf32>
    %c0_74 = arith.constant 0 : index
    %329 = arith.index_cast %286 : i32 to index
    %c0_75 = arith.constant 0 : index
    %c0_76 = arith.constant 0 : index
    %330 = vector.load %arg5[%c0_74, %329, %c0_75, %c0_76] : memref<1x8x8x32xf32, #tpu.memory_space<vmem>>, vector<1x1x8x32xf32>
    %331 = vector.shape_cast %330 : vector<1x1x8x32xf32> to vector<1x8x32xf32>
    %332 = vector.shape_cast %328 : vector<1x8x32xf32> to vector<1x1x8x32xf32>
    tpu.vector_store %arg5[%c0_74, %329, %c0_75, %c0_76], %332 {strides = array<i32>} : memref<1x8x8x32xf32, #tpu.memory_space<vmem>>, vector<1x1x8x32xf32>,
    %333 = vector.shape_cast %323 : vector<8x1xi1> to vector<8x1xi1>
    %334 = vector.broadcast %333 : vector<8x1xi1> to vector<8x32xi1>
    %335 = arith.select %334, %321, %281 : vector<8x32xi1>, vector<8x32xf32>
    %336 = vector.shape_cast %323 : vector<8x1xi1> to vector<8x1xi1>
    %337 = vector.broadcast %336 : vector<8x1xi1> to vector<8x32xi1>
    %338 = arith.select %337, %319, %284 : vector<8x32xi1>, vector<8x32xf32>
    %c6_i32 = arith.constant 6 : i32
    %339 = arith.muli %7, %c6_i32 : i32
    %340 = arith.addi %8, %339 : i32
    %341 = arith.muli %7, %c6_i32 : i32
    %342 = arith.addi %12, %341 : i32
    %c0_77 = arith.constant 0 : index
    %343 = arith.index_cast %340 : i32 to index
    %c0_78 = arith.constant 0 : index
    %c0_79 = arith.constant 0 : index
    %344 = vector.load %arg2[%c0_77, %343, %c0_78, %c0_79] : memref<1x8x8x128xbf16, #tpu.memory_space<vmem>>, vector<1x1x8x128xbf16>
    %345 = vector.shape_cast %344 : vector<1x1x8x128xbf16> to vector<1x8x128xbf16>
    %346 = vector.shape_cast %345 : vector<1x8x128xbf16> to vector<8x128xbf16>
    %347 = arith.extf %346 : vector<8x128xbf16> to vector<8x128xf32>
    %348 = arith.truncf %335 : vector<8x32xf32> to vector<8x32xbf16>
    %cst_80 = arith.constant dense<0.000000e+00> : vector<8x128xf32>
    %349 = tpu.matmul %348, %4, %cst_80 {dimension_numbers = #tpu.dot_dimension_numbers<[1], [0], [0], [1], [0, 0, 1, 1], [], []>} : vector<8x32xbf16>, vector<32x128xbf16>, vector<8x128xf32> -> vector<8x128xf32>
    %350 = arith.addf %347, %349 : vector<8x128xf32>
    %351 = vector.extract_strided_slice %350 {offsets = [0, 0], sizes = [8, 32], strides = [1, 1]} : vector<8x128xf32> to vector<8x32xf32>
    %352 = arith.negf %351 : vector<8x32xf32>
    %353 = math.exp %352 : vector<8x32xf32>
    %cst_81 = arith.constant 1.000000e+00 : f32
    %354 = vector.broadcast %cst_81 : f32 to vector<8x32xf32>
    %355 = arith.addf %354, %353 : vector<8x32xf32>
    %356 = arith.divf %354, %355 : vector<8x32xf32>
    %357 = vector.extract_strided_slice %350 {offsets = [0, 32], sizes = [8, 32], strides = [1, 1]} : vector<8x128xf32> to vector<8x32xf32>
    %358 = arith.negf %357 : vector<8x32xf32>
    %359 = math.exp %358 : vector<8x32xf32>
    %cst_82 = arith.constant 1.000000e+00 : f32
    %360 = vector.broadcast %cst_82 : f32 to vector<8x32xf32>
    %361 = arith.addf %360, %359 : vector<8x32xf32>
    %362 = arith.divf %360, %361 : vector<8x32xf32>
    %363 = vector.extract_strided_slice %350 {offsets = [0, 64], sizes = [8, 32], strides = [1, 1]} : vector<8x128xf32> to vector<8x32xf32>
    %364 = math.tanh %363 : vector<8x32xf32>
    %365 = vector.extract_strided_slice %350 {offsets = [0, 96], sizes = [8, 32], strides = [1, 1]} : vector<8x128xf32> to vector<8x32xf32>
    %366 = arith.negf %365 : vector<8x32xf32>
    %367 = math.exp %366 : vector<8x32xf32>
    %cst_83 = arith.constant 1.000000e+00 : f32
    %368 = vector.broadcast %cst_83 : f32 to vector<8x32xf32>
    %369 = arith.addf %368, %367 : vector<8x32xf32>
    %370 = arith.divf %368, %369 : vector<8x32xf32>
    %371 = arith.mulf %362, %338 : vector<8x32xf32>
    %372 = arith.mulf %356, %364 : vector<8x32xf32>
    %373 = arith.addf %371, %372 : vector<8x32xf32>
    %374 = math.tanh %373 : vector<8x32xf32>
    %375 = arith.mulf %370, %374 : vector<8x32xf32>
    %376 = vector.broadcast %342 : i32 to vector<8x1xi32>
    %377 = arith.cmpi slt, %376, %5 : vector<8x1xi32>
    %cst_84 = arith.constant 0.000000e+00 : f32
    %378 = vector.shape_cast %377 : vector<8x1xi1> to vector<8x1xi1>
    %379 = vector.broadcast %378 : vector<8x1xi1> to vector<8x32xi1>
    %380 = vector.broadcast %cst_84 : f32 to vector<8x32xf32>
    %381 = arith.select %379, %375, %380 : vector<8x32xi1>, vector<8x32xf32>
    %382 = vector.shape_cast %381 : vector<8x32xf32> to vector<1x8x32xf32>
    %c0_85 = arith.constant 0 : index
    %383 = arith.index_cast %340 : i32 to index
    %c0_86 = arith.constant 0 : index
    %c0_87 = arith.constant 0 : index
    %384 = vector.load %arg5[%c0_85, %383, %c0_86, %c0_87] : memref<1x8x8x32xf32, #tpu.memory_space<vmem>>, vector<1x1x8x32xf32>
    %385 = vector.shape_cast %384 : vector<1x1x8x32xf32> to vector<1x8x32xf32>
    %386 = vector.shape_cast %382 : vector<1x8x32xf32> to vector<1x1x8x32xf32>
    tpu.vector_store %arg5[%c0_85, %383, %c0_86, %c0_87], %386 {strides = array<i32>} : memref<1x8x8x32xf32, #tpu.memory_space<vmem>>, vector<1x1x8x32xf32>,
    %387 = vector.shape_cast %377 : vector<8x1xi1> to vector<8x1xi1>
    %388 = vector.broadcast %387 : vector<8x1xi1> to vector<8x32xi1>
    %389 = arith.select %388, %375, %335 : vector<8x32xi1>, vector<8x32xf32>
    %390 = vector.shape_cast %377 : vector<8x1xi1> to vector<8x1xi1>
    %391 = vector.broadcast %390 : vector<8x1xi1> to vector<8x32xi1>
    %392 = arith.select %391, %373, %338 : vector<8x32xi1>, vector<8x32xf32>
    %c7_i32_88 = arith.constant 7 : i32
    %393 = arith.muli %7, %c7_i32_88 : i32
    %394 = arith.addi %8, %393 : i32
    %395 = arith.muli %7, %c7_i32_88 : i32
    %396 = arith.addi %12, %395 : i32
    %c0_89 = arith.constant 0 : index
    %397 = arith.index_cast %394 : i32 to index
    %c0_90 = arith.constant 0 : index
    %c0_91 = arith.constant 0 : index
    %398 = vector.load %arg2[%c0_89, %397, %c0_90, %c0_91] : memref<1x8x8x128xbf16, #tpu.memory_space<vmem>>, vector<1x1x8x128xbf16>
    %399 = vector.shape_cast %398 : vector<1x1x8x128xbf16> to vector<1x8x128xbf16>
    %400 = vector.shape_cast %399 : vector<1x8x128xbf16> to vector<8x128xbf16>
    %401 = arith.extf %400 : vector<8x128xbf16> to vector<8x128xf32>
    %402 = arith.truncf %389 : vector<8x32xf32> to vector<8x32xbf16>
    %cst_92 = arith.constant dense<0.000000e+00> : vector<8x128xf32>
    %403 = tpu.matmul %402, %4, %cst_92 {dimension_numbers = #tpu.dot_dimension_numbers<[1], [0], [0], [1], [0, 0, 1, 1], [], []>} : vector<8x32xbf16>, vector<32x128xbf16>, vector<8x128xf32> -> vector<8x128xf32>
    %404 = arith.addf %401, %403 : vector<8x128xf32>
    %405 = vector.extract_strided_slice %404 {offsets = [0, 0], sizes = [8, 32], strides = [1, 1]} : vector<8x128xf32> to vector<8x32xf32>
    %406 = arith.negf %405 : vector<8x32xf32>
    %407 = math.exp %406 : vector<8x32xf32>
    %cst_93 = arith.constant 1.000000e+00 : f32
    %408 = vector.broadcast %cst_93 : f32 to vector<8x32xf32>
    %409 = arith.addf %408, %407 : vector<8x32xf32>
    %410 = arith.divf %408, %409 : vector<8x32xf32>
    %411 = vector.extract_strided_slice %404 {offsets = [0, 32], sizes = [8, 32], strides = [1, 1]} : vector<8x128xf32> to vector<8x32xf32>
    %412 = arith.negf %411 : vector<8x32xf32>
    %413 = math.exp %412 : vector<8x32xf32>
    %cst_94 = arith.constant 1.000000e+00 : f32
    %414 = vector.broadcast %cst_94 : f32 to vector<8x32xf32>
    %415 = arith.addf %414, %413 : vector<8x32xf32>
    %416 = arith.divf %414, %415 : vector<8x32xf32>
    %417 = vector.extract_strided_slice %404 {offsets = [0, 64], sizes = [8, 32], strides = [1, 1]} : vector<8x128xf32> to vector<8x32xf32>
    %418 = math.tanh %417 : vector<8x32xf32>
    %419 = vector.extract_strided_slice %404 {offsets = [0, 96], sizes = [8, 32], strides = [1, 1]} : vector<8x128xf32> to vector<8x32xf32>
    %420 = arith.negf %419 : vector<8x32xf32>
    %421 = math.exp %420 : vector<8x32xf32>
    %cst_95 = arith.constant 1.000000e+00 : f32
    %422 = vector.broadcast %cst_95 : f32 to vector<8x32xf32>
    %423 = arith.addf %422, %421 : vector<8x32xf32>
    %424 = arith.divf %422, %423 : vector<8x32xf32>
    %425 = arith.mulf %416, %392 : vector<8x32xf32>
    %426 = arith.mulf %410, %418 : vector<8x32xf32>
    %427 = arith.addf %425, %426 : vector<8x32xf32>
    %428 = math.tanh %427 : vector<8x32xf32>
    %429 = arith.mulf %424, %428 : vector<8x32xf32>
    %430 = vector.broadcast %396 : i32 to vector<8x1xi32>
    %431 = arith.cmpi slt, %430, %5 : vector<8x1xi32>
    %cst_96 = arith.constant 0.000000e+00 : f32
    %432 = vector.shape_cast %431 : vector<8x1xi1> to vector<8x1xi1>
    %433 = vector.broadcast %432 : vector<8x1xi1> to vector<8x32xi1>
    %434 = vector.broadcast %cst_96 : f32 to vector<8x32xf32>
    %435 = arith.select %433, %429, %434 : vector<8x32xi1>, vector<8x32xf32>
    %436 = vector.shape_cast %435 : vector<8x32xf32> to vector<1x8x32xf32>
    %c0_97 = arith.constant 0 : index
    %437 = arith.index_cast %394 : i32 to index
    %c0_98 = arith.constant 0 : index
    %c0_99 = arith.constant 0 : index
    %438 = vector.load %arg5[%c0_97, %437, %c0_98, %c0_99] : memref<1x8x8x32xf32, #tpu.memory_space<vmem>>, vector<1x1x8x32xf32>
    %439 = vector.shape_cast %438 : vector<1x1x8x32xf32> to vector<1x8x32xf32>
    %440 = vector.shape_cast %436 : vector<1x8x32xf32> to vector<1x1x8x32xf32>
    tpu.vector_store %arg5[%c0_97, %437, %c0_98, %c0_99], %440 {strides = array<i32>} : memref<1x8x8x32xf32, #tpu.memory_space<vmem>>, vector<1x1x8x32xf32>,
    %441 = vector.shape_cast %431 : vector<8x1xi1> to vector<8x1xi1>
    %442 = vector.broadcast %441 : vector<8x1xi1> to vector<8x32xi1>
    %443 = arith.select %442, %429, %389 : vector<8x32xi1>, vector<8x32xf32>
    %444 = vector.shape_cast %431 : vector<8x1xi1> to vector<8x1xi1>
    %445 = vector.broadcast %444 : vector<8x1xi1> to vector<8x32xi1>
    %446 = arith.select %445, %427, %392 : vector<8x32xi1>, vector<8x32xf32>
    %c8_i32_100 = arith.constant 8 : i32
    %c0_101 = arith.constant 0 : index
    %c0_102 = arith.constant 0 : index
    %447 = vector.load %arg6[%c0_101, %c0_102] : memref<8x32xf32, #tpu.memory_space<vmem>>, vector<8x32xf32>
    tpu.vector_store %arg6[%c0_101, %c0_102], %443 {strides = array<i32>} : memref<8x32xf32, #tpu.memory_space<vmem>>, vector<8x32xf32>,
    %c0_103 = arith.constant 0 : index
    %c0_104 = arith.constant 0 : index
    %448 = vector.load %arg7[%c0_103, %c0_104] : memref<8x32xf32, #tpu.memory_space<vmem>>, vector<8x32xf32>
    tpu.vector_store %arg7[%c0_103, %c0_104], %446 {strides = array<i32>} : memref<8x32xf32, #tpu.memory_space<vmem>>, vector<8x32xf32>,
    return
  }
  func.func @transform_0(%arg0: i32, %arg1: i32) -> (i32, i32, i32, i32) {
    %c1_i32 = arith.constant 1 : i32
    %0 = arith.subi %c1_i32, %arg0 : i32
    %1 = arith.muli %0, %arg1 : i32
    %c1_i32_0 = arith.constant 1 : i32
    %2 = arith.subi %c1_i32_0, %arg1 : i32
    %3 = arith.muli %arg0, %2 : i32
    %4 = arith.addi %1, %3 : i32
    %c0_i32 = arith.constant 0 : i32
    %c0_i32_1 = arith.constant 0 : i32
    %c0_i32_2 = arith.constant 0 : i32
    return %arg0, %4, %c0_i32, %c0_i32_1 : i32, i32, i32, i32
  }
  func.func @transform_1(%arg0: i32, %arg1: i32) -> (i32, i32, i32) {
    %c0_i32 = arith.constant 0 : i32
    %c0_i32_0 = arith.constant 0 : i32
    %c0_i32_1 = arith.constant 0 : i32
    return %arg0, %c0_i32, %c0_i32_0 : i32, i32, i32
  }
  func.func @transform_2(%arg0: i32, %arg1: i32) -> (i32, i32) {
    %c0_i32 = arith.constant 0 : i32
    %c0_i32_0 = arith.constant 0 : i32
    %c0_i32_1 = arith.constant 0 : i32
    return %c0_i32, %c0_i32_0 : i32, i32
  }
  func.func @transform_3(%arg0: i32, %arg1: i32) -> (i32, i32, i32, i32) {
    %c1_i32 = arith.constant 1 : i32
    %0 = arith.subi %c1_i32, %arg0 : i32
    %1 = arith.muli %0, %arg1 : i32
    %c1_i32_0 = arith.constant 1 : i32
    %2 = arith.subi %c1_i32_0, %arg1 : i32
    %3 = arith.muli %arg0, %2 : i32
    %4 = arith.addi %1, %3 : i32
    %c0_i32 = arith.constant 0 : i32
    %c0_i32_1 = arith.constant 0 : i32
    %c0_i32_2 = arith.constant 0 : i32
    return %arg0, %4, %c0_i32, %c0_i32_1 : i32, i32, i32, i32
  }
}

</mosaic_0001>

<llo_original>
// kernel: tpu_custom_call.1
$region0: #{tpu_custom_call.1}
  #allocation0 [shape = 'u32[]', space=smem, size = 0x4, offset = 0x4, fixed_abs, tag = 'smem constant byte address 0x4 - core index']
  #allocation1 [shape = 'u32[144,128]{1,0:T(1,128)}', space=vmem, size = 0x12000, scoped, tag = 'internal scratch']
  #allocation2 [shape = 'f32[8,32]{1,0:T(8,128)}', space=vmem, size = 0x1000, scoped, tag = 'scratch operand']
  #allocation3 [shape = 'f32[8,32]{1,0:T(8,128)}', space=vmem, size = 0x1000, scoped, tag = 'scratch operand']
  %s0 = inlined_call_operand.hbm [shape: bf16[2,16,8,128], index: 0, kind: input, shape index: {}]
  %s1 = inlined_call_operand.hbm [shape: bf16[2,32,128], index: 1, kind: input, shape index: {}]
  %s2 = inlined_call_operand.vmem [shape: s32[8,1], index: 2, kind: input, shape index: {}]
  %s3 = inlined_call_operand.hbm [shape: f32[2,16,8,32], index: 3, kind: output, shape index: {}]
  %s4 = sld [smem:[#allocation0]]
  $region57: #{tpu_custom_call.1} parent=0
    _
  %s6 = ssub.s32 1, %s4
  %s7 = scalar_select 0, %s6, %s4
  $region1: #{tpu_custom_call.1} parent=0
    #allocation4 [shape = 'u8[32768]{0}', space=vmem, size = 0x8000, scoped, tag = 'input window, operand 0']
    #allocation5 [shape = 's32[2]{0}', space=sflag, size = 0x8, scoped, tag = 'scoped memory for tpu_custom_call.1']
    #allocation6 [shape = 's32[2]{0}', space=sflag, size = 0x8, scoped, tag = 'scoped memory for tpu_custom_call.1']
    #allocation7 [shape = 'u8[16384]{0}', space=vmem, size = 0x4000, scoped, tag = 'input window, operand 1']
    #allocation8 [shape = 's32[2]{0}', space=sflag, size = 0x8, scoped, tag = 'scoped memory for tpu_custom_call.1']
    #allocation9 [shape = 'u8[65536]{0}', space=vmem, size = 0x10000, scoped, tag = 'output window, operand 0']
    %8 = vsyncpa [#allocation5], 0
    %s9 = scalar_lea.sflag [#allocation5], 1
    %10 = vsyncpa %s9, 0
    %11 = vsyncpa [#allocation8], 0
    %s12 = scalar_lea.sflag [#allocation8], 1
    %13 = vsyncpa %s12, 0
    %14 = vsyncpa [#allocation6], 0
    %s15 = scalar_lea.sflag [#allocation6], 1
    %16 = vsyncpa %s15, 0
    loop: start=0, step=1, limit=6
    $region2: #{tpu_custom_call.1} parent=1 // loop_pre_header
      _
    $region3: #{tpu_custom_call.1} parent=1 // loop_header
      %s18 = sphi 0, %s22
      %p19 = scmp.ge.s32.totalorder %s18, 6
      %s25 = sphi 0, %s37
      %s26 = sphi 0, %s33
      %s27 = sphi 0, %s25
      %s28 = sphi 0, %s26
      %s29 = sphi 0, %s27
      %s30 = sphi 0, %s28
      %s52 = sphi 0, %s54
      %s55 = sphi 0, %s52
      %s56 = sphi 0, %s55
      %s72 = sphi 0, %s56
      %s78 = sphi 0, %s80
      %s81 = sphi 0, %s78
      %s82 = sphi 0, %s81
      %s98 = sphi 0, %s82
      %s102 = sphi 0, %s102
      %s104 = sphi 0, %s102
      %s105 = sphi 0, %s104
      %s119 = sphi 0, %s105
      %s137 = sphi 0, %s139
      %s140 = sphi 0, %s137
      %s141 = sphi 0, %s140
      %s157 = sphi 0, %s141
    $region4: #{tpu_custom_call.1} parent=1 // loop_header_branch
      %21 = sbr.rel (%p19) target = $region8
    $region5: #{tpu_custom_call.1} parent=1 // loop_body
      %s23 = ssub.s32 %s18, 1
      %s24 = ssub.s32 %s18, 2
      %s31 = sadd.s32 1, %s26
      %p32 = scmp.ge.s32.totalorder %s31, 2
      %s33 = scalar_select %p32, 0, %s31
      %s34 = sadd.s32 1, %s25
      %s35 = scalar_select %p32, %s34, %s25
      %p36 = scmp.ge.s32.totalorder %s35, 2
      %s37 = scalar_select %p36, 0, %s35
      %s38 = ssub.s32 1, %s25
      %s39 = smul.u32 %s38, %s26
      %s40 = ssub.s32 1, %s26
      %s41 = smul.u32 %s25, %s40
      %s42 = sadd.s32 %s39, %s41
      %s43 = ssub.s32 1, %s37
      %s44 = smul.u32 %s43, %s33
      %s45 = ssub.s32 1, %s33
      %s46 = smul.u32 %s37, %s45
      %s47 = sadd.s32 %s44, %s46
      %s48 = ssub.s32 %s25, %s37
      %s49 = ssub.s32 %s42, %s47
      %s50 = sor.u32 %s48, %s49
      %p51 = scmp.eq.s32.totalorder %s50, 0
      %s53 = sadd.s32 %s52, 1
      %s54 = scalar_select %p51, %s52, %s53
      %p57 = pneg %p51
      %p58 = scmp.eq.s32.totalorder %s18, 3
      %p59 = por %p57, %p58
      %p60 = scmp.ne.s32.totalorder %s52, %s55
      %p61 = scmp.eq.s32.totalorder %s18, 0
      %p62 = por %p60, %p61
      %p63 = scmp.ne.s32.totalorder %s52, %s55
      %p64 = scmp.eq.s32.totalorder %s23, 3
      %p65 = por %p63, %p64
      %p66 = scmp.ne.s32.totalorder %s55, %s56
      %p67 = scmp.eq.s32.totalorder %s23, 0
      %p68 = por %p66, %p67
      %p69 = scmp.ne.s32.totalorder %s55, %s56
      %p70 = scmp.eq.s32.totalorder %s24, 3
      %p71 = por %p69, %p70
      %p73 = scmp.ne.s32.totalorder %s56, %s72
      %p74 = scmp.eq.s32.totalorder %s24, 0
      %p75 = por %p73, %p74
      %s76 = ssub.s32 %s25, %s37
      %p77 = scmp.eq.s32.totalorder %s76, 0
      %s79 = sadd.s32 %s78, 1
      %s80 = scalar_select %p77, %s78, %s79
      %p83 = pneg %p77
      %p84 = scmp.eq.s32.totalorder %s18, 3
      %p85 = por %p83, %p84
      %p86 = scmp.ne.s32.totalorder %s78, %s81
      %p87 = scmp.eq.s32.totalorder %s18, 0
      %p88 = por %p86, %p87
      %p89 = scmp.ne.s32.totalorder %s78, %s81
      %p90 = scmp.eq.s32.totalorder %s23, 3
      %p91 = por %p89, %p90
      %p92 = scmp.ne.s32.totalorder %s81, %s82
      %p93 = scmp.eq.s32.totalorder %s23, 0
      %p94 = por %p92, %p93
      %p95 = scmp.ne.s32.totalorder %s81, %s82
      %p96 = scmp.eq.s32.totalorder %s24, 3
      %p97 = por %p95, %p96
      %p99 = scmp.ne.s32.totalorder %s82, %s98
      %p100 = scmp.eq.s32.totalorder %s24, 0
      %p101 = por %p99, %p100
      %s103 = sadd.s32 %s102, 1
      %p106 = scmp.eq.s32.totalorder %s18, 3
      %p107 = scmp.ne.s32.totalorder %s102, %s104
      %p108 = scmp.eq.s32.totalorder %s18, 0
      %p109 = por %p107, %p108
      %p110 = scmp.ne.s32.totalorder %s102, %s104
      %p111 = scmp.eq.s32.totalorder %s23, 3
      %p112 = por %p110, %p111
      %p113 = scmp.ne.s32.totalorder %s104, %s105
      %p114 = scmp.eq.s32.totalorder %s23, 0
      %p115 = por %p113, %p114
      %p116 = scmp.ne.s32.totalorder %s104, %s105
      %p117 = scmp.eq.s32.totalorder %s24, 3
      %p118 = por %p116, %p117
      %p120 = scmp.ne.s32.totalorder %s105, %s119
      %p121 = scmp.eq.s32.totalorder %s24, 0
      %p122 = por %p120, %p121
      %s123 = ssub.s32 1, %s25
      %s124 = smul.u32 %s123, %s26
      %s125 = ssub.s32 1, %s26
      %s126 = smul.u32 %s25, %s125
      %s127 = sadd.s32 %s124, %s126
      %s128 = ssub.s32 1, %s37
      %s129 = smul.u32 %s128, %s33
      %s130 = ssub.s32 1, %s33
      %s131 = smul.u32 %s37, %s130
      %s132 = sadd.s32 %s129, %s131
      %s133 = ssub.s32 %s25, %s37
      %s134 = ssub.s32 %s127, %s132
      %s135 = sor.u32 %s133, %s134
      %p136 = scmp.eq.s32.totalorder %s135, 0
      %s138 = sadd.s32 %s137, 1
      %s139 = scalar_select %p136, %s137, %s138
      %p142 = pneg %p136
      %p143 = scmp.eq.s32.totalorder %s18, 3
      %p144 = por %p142, %p143
      %p145 = scmp.ne.s32.totalorder %s137, %s140
      %p146 = scmp.eq.s32.totalorder %s18, 0
      %p147 = por %p145, %p146
      %p148 = scmp.ne.s32.totalorder %s137, %s140
      %p149 = scmp.eq.s32.totalorder %s23, 3
      %p150 = por %p148, %p149
      %p151 = scmp.ne.s32.totalorder %s140, %s141
      %p152 = scmp.eq.s32.totalorder %s23, 0
      %p153 = por %p151, %p152
      %p154 = scmp.ne.s32.totalorder %s140, %s141
      %p155 = scmp.eq.s32.totalorder %s24, 3
      %p156 = por %p154, %p155
      %p158 = scmp.ne.s32.totalorder %s141, %s157
      %p159 = scmp.eq.s32.totalorder %s24, 0
      %p160 = por %p158, %p159
      %p161 = scmp.le.s32.totalorder 1, %s18
      %p162 = scmp.lt.s32.totalorder %s18, 5
      %p163 = pnand %p161, %p162
      %p164 = pneg %p163
      // Predicated region
      $region9: #{tpu_custom_call.1} parent=5 // pred_check
        _
      $region10: #{tpu_custom_call.1} parent=5 // pred_check_branch
        %166 = sbr.rel (%p163) target = $region12
      $region11: #{tpu_custom_call.1} parent=5 // pred_region
        %s167 = ssub.s32 %s18, 1
        // Predicated region
        $region13: #{tpu_custom_call.1} parent=11 // pred_check
          %p168 = pneg %p115
        $region14: #{tpu_custom_call.1} parent=11 // pred_check_branch
          %170 = sbr.rel (%p168) target = $region16
        $region15: #{tpu_custom_call.1} parent=11 // pred_region
          _
        $region16: #{tpu_custom_call.1} parent=11 // pred_fallthru
          _
      $region12: #{tpu_custom_call.1} parent=5 // pred_fallthru
        _
      %p171 = scmp.lt.s32.totalorder %s18, 4
      // Predicated region
      $region17: #{tpu_custom_call.1} parent=5 // pred_check
        %p172 = pneg %p171
      $region18: #{tpu_custom_call.1} parent=5 // pred_check_branch
        %174 = sbr.rel (%p172) target = $region20
      $region19: #{tpu_custom_call.1} parent=5 // pred_region
        // Predicated region
        $region21: #{tpu_custom_call.1} parent=19 // pred_check
          %p175 = pneg %p62
        $region22: #{tpu_custom_call.1} parent=19 // pred_check_branch
          %177 = sbr.rel (%p175) target = $region24
        $region23: #{tpu_custom_call.1} parent=19 // pred_region
          %s178 = sand.u32 %s52, 1
          %s179 = scalar_lea.sflag [#allocation5], %s178
          %s180 = sand.u32 %s52, 1
          %s181 = smul.addr %s180, 32
          %s182 = scalar_lea.vmem [#allocation4], %s181
          %s183 = ssub.s32 1, %s25
          %s184 = smul.u32 %s183, %s26
          %s185 = ssub.s32 1, %s26
          %s186 = smul.u32 %s25, %s185
          %s187 = sadd.s32 %s184, %s186
          %s188 = smul.u32 8, %s187
          %s190 = ssub.s32 512, 512
          %191 = vsyncadd %s179, %s190
          %s192 = smul.addr %s25, 16
          %s193 = sadd.s32 %s188, %s192
          %s194 = smul.addr %s193, 64
          %s195 = scalar_lea.hbm %s0, %s194
          %s196 = sshll.u32 %s182, 4
          %s197 = int_to_ptr.vmem [resolvable:$true] %s196
          %202 = dma.hbm_to_vmem [thread:$0]  %s195, 512, %s197, %s179, 64, 64, 4
        $region24: #{tpu_custom_call.1} parent=19 // pred_fallthru
          _
        // Predicated region
        $region25: #{tpu_custom_call.1} parent=19 // pred_check
          %p203 = pneg %p88
        $region26: #{tpu_custom_call.1} parent=19 // pred_check_branch
          %205 = sbr.rel (%p203) target = $region28
        $region27: #{tpu_custom_call.1} parent=19 // pred_region
          %s206 = sand.u32 %s78, 1
          %s207 = scalar_lea.sflag [#allocation8], %s206
          %s208 = sand.u32 %s78, 1
          %s209 = smul.addr %s208, 16
          %s210 = scalar_lea.vmem [#allocation7], %s209
          %s212 = ssub.s32 256, 256
          %213 = vsyncadd %s207, %s212
          %s214 = smul.addr %s25, 4
          %s215 = smul.addr %s214, 64
          %s216 = scalar_lea.hbm %s1, %s215
          %s217 = sshll.u32 %s210, 4
          %s218 = int_to_ptr.vmem [resolvable:$true] %s217
          %223 = dma.hbm_to_vmem [thread:$0]  %s216, 256, %s218, %s207, 64, 64, 4
        $region28: #{tpu_custom_call.1} parent=19 // pred_fallthru
          _
      $region20: #{tpu_custom_call.1} parent=5 // pred_fallthru
        _
      %p224 = scmp.le.s32.totalorder 1, %s18
      %p225 = scmp.lt.s32.totalorder %s18, 5
      %p226 = pnand %p224, %p225
      %p227 = pneg %p226
      // Predicated region
      $region29: #{tpu_custom_call.1} parent=5 // pred_check
        _
      $region30: #{tpu_custom_call.1} parent=5 // pred_check_branch
        %229 = sbr.rel (%p226) target = $region32
      $region31: #{tpu_custom_call.1} parent=5 // pred_region
        %s230 = ssub.s32 %s18, 1
        %s231 = sand.u32 %s55, 1
        %s232 = scalar_lea.sflag [#allocation5], %s231
        %s233 = sand.u32 %s55, 1
        %s234 = smul.addr %s233, 32
        %s235 = scalar_lea.vmem [#allocation4], %s234
        // Predicated region
        $region33: #{tpu_custom_call.1} parent=31 // pred_check
          %p236 = pneg %p68
        $region34: #{tpu_custom_call.1} parent=31 // pred_check_branch
          %238 = sbr.rel (%p236) target = $region36
        $region35: #{tpu_custom_call.1} parent=31 // pred_region
          %239 = dma.done %s232, 512
        $region36: #{tpu_custom_call.1} parent=31 // pred_fallthru
          _
        %s240 = sand.u32 %s81, 1
        %s241 = scalar_lea.sflag [#allocation8], %s240
        %s242 = sand.u32 %s81, 1
        %s243 = smul.addr %s242, 16
        %s244 = scalar_lea.vmem [#allocation7], %s243
        // Predicated region
        $region37: #{tpu_custom_call.1} parent=31 // pred_check
          %p245 = pneg %p94
        $region38: #{tpu_custom_call.1} parent=31 // pred_check_branch
          %247 = sbr.rel (%p245) target = $region40
        $region39: #{tpu_custom_call.1} parent=31 // pred_region
          %248 = dma.done %s241, 256
        $region40: #{tpu_custom_call.1} parent=31 // pred_fallthru
          _
        %s249 = sand.u32 %s55, 1
        %s250 = scalar_lea.sflag [#allocation5], %s249
        %s251 = sand.u32 %s55, 1
        %s252 = smul.addr %s251, 32
        %s253 = scalar_lea.vmem [#allocation4], %s252
        %p254 = pneg %p68
        %p255 = pneg %p65
        %s256 = sand.u32 %s81, 1
        %s257 = scalar_lea.sflag [#allocation8], %s256
        %s258 = sand.u32 %s81, 1
        %s259 = smul.addr %s258, 16
        %s260 = scalar_lea.vmem [#allocation7], %s259
        %p261 = pneg %p94
        %p262 = pneg %p91
        %p263 = pneg %p115
        %p264 = pneg %p112
        %p265 = pneg %p153
        %p266 = pneg %p150
        %s267 = sand.u32 %s140, 1
        %s268 = scalar_lea.sflag [#allocation6], %s267
        %s269 = sand.u32 %s140, 1
        %s270 = smul.addr %s269, 64
        %s271 = scalar_lea.vmem [#allocation9], %s270
        %s272 = ssub.s32 1, %s27
        %s273 = smul.u32 %s272, %s28
        %s274 = ssub.s32 1, %s28
        %s275 = smul.u32 %s27, %s274
        %s276 = sadd.s32 %s273, %s275
        %s277 = smul.u32 8, %s276
        %s278 = ssub.s32 1, %s27
        %s279 = smul.u32 %s278, %s28
        %s280 = ssub.s32 1, %s28
        %s281 = smul.u32 %s27, %s280
        %s282 = sadd.s32 %s279, %s281
        %s283 = smul.u32 8, %s282
        %p285 = scmp.eq.s32.totalorder %s28, 0
        // Predicated region
        $region41: #{tpu_custom_call.1} parent=31 // pred_check
          %p286 = pneg %p285
        $region42: #{tpu_custom_call.1} parent=31 // pred_check_branch
          %288 = sbr.rel (%p286) target = $region44
        $region43: #{tpu_custom_call.1} parent=31 // pred_region
          %vm289 = vcmask 261120
          %290 = vst.msk [vmem:[#allocation2] sm:$0xff] %vm289, 0.0
          %291 = vst.msk [vmem:[#allocation3] sm:$0xff] %vm289, 0.0
        $region44: #{tpu_custom_call.1} parent=31 // pred_fallthru
          _
        %v292 = vld [vmem:[%s244] sm:$0xf]
        %v293 = vld [vmem:[%s244 + $0x4] sm:$0xf]
        %v294 = vld [vmem:[%s244 + $0x8] sm:$0xf]
        %v295 = vld [vmem:[%s244 + $0xc] sm:$0xf]
        %v296 = vld [vmem:[%s2] sm:$0xff]
        %s297 = smul.u32 %s27, 2
        %s298 = ssub.s32 1, %s297
        %s299 = smul.u32 %s27, 7
        %s300 = smul.u32 %s28, 8
        %s301 = smul.u32 %s298, %s300
        %s302 = smul.u32 %s27, 15
        %s303 = sadd.s32 %s301, %s302
        %v304 = vld [vmem:[#allocation2] sm:$0xff]
        %v305 = vld [vmem:[#allocation3] sm:$0xff]
        %s306 = smul.addr %s299, 4
        %s307 = scalar_lea.vmem %s235, %s306 [#allocation4]
        %v308 = vld [vmem:[%s307] sm:$0xf]
        %v309 = vunpack.c.l.bf16 %v308
        %v310 = vpack.c.bf16 %v304, %v304
        %v315 = vunpack.c.l.b16 %v292
        %v316 = vunpack.c.l.b16 %v293
        %v317 = vunpack.c.l.b16 %v294
        %v318 = vunpack.c.l.b16 %v295
        %v319 = vpack.c.b16 %v316, %v315
        %v320 = vpack.c.b16 %v318, %v317
        %vm323 = vcmask 261120
        %v325 = vsel %vm323, %v310, 0
        %327 = vmatprep.subr.bf16.mxu0 0
        %328 = vmatpush1.bf16.msra.mxu0 %v319
        %329 = vmatprep.subr.bf16.mxu0 0
        %330 = vmatpush1.bf16.msra.mxu0 %v320
        %331 = vmatprep.subr.bf16.mxu0 0
        %332 = vmatpush1.bf16.msra.mxu0 0
        %333 = vmatprep.subr.bf16.mxu0 0
        %334 = vmatpush1.bf16.msra.mxu0 0
        %335 = vmatprep.subr.bf16.mxu0 0
        %336 = vmatpush1.bf16.msra.mxu0 0
        %337 = vmatprep.subr.bf16.mxu0 0
        %338 = vmatpush1.bf16.msra.mxu0 0
        %339 = vmatprep.subr.bf16.mxu0 0
        %340 = vmatpush1.bf16.msra.mxu0 0
        %341 = vmatprep.subr.bf16.mxu0 0
        %342 = vmatpush1.bf16.msra.mxu0 0
        %343 = vmatprep.subr.bf16.mxu0 0
        %344 = vmatpush1.bf16.msra.mxu0 0
        %345 = vmatprep.subr.bf16.mxu0 0
        %346 = vmatpush1.bf16.msra.mxu0 0
        %347 = vmatprep.subr.bf16.mxu0 0
        %348 = vmatpush1.bf16.msra.mxu0 0
        %349 = vmatprep.subr.bf16.mxu0 0
        %350 = vmatpush1.bf16.msra.mxu0 0
        %351 = vmatprep.subr.bf16.mxu0 0
        %352 = vmatpush1.bf16.msra.mxu0 0
        %353 = vmatprep.subr.bf16.mxu0 0
        %354 = vmatpush1.bf16.msra.mxu0 0
        %355 = vmatprep.subr.bf16.mxu0 0
        %356 = vmatpush1.bf16.msra.mxu0 0
        %357 = vmatprep.subr.bf16.mxu0 0
        %358 = vmatpush1.bf16.msra.mxu0 0
        %359 = vmatprep.mubr.bf16.mxu0 0
        %360 = vmatmul.mubr.bf16.gmra.mrb[0].mxu0 %v325
        %v361 = vpop.f32.mrb[0].mxu0
        %v362 = vadd.f32 0.0, %v361
        %v363 = vpop.f32.mrb[0].mxu0
        %v364 = vpop.f32.mrb[0].mxu0
        %v365 = vpop.f32.mrb[0].mxu0
        %366 = vdwg.mxu0
        %v367 = vadd.f32 %v309, %v362
        %v368 = vxor.u32 %v367, 2147483648
        %v369 = vmul.f32 %v368, 1.442695
        %v370 = vpow.pop %v369
        %v371 = vadd.f32 %v370, 1.0
        %v372 = vrcp.pop %v371
        %v373 = vmul.f32 1.0, %v372
        %v374 = vtanh.pop %v367
        %376 = vrot.lane.b32.xlu0 %v305, 32
        %v377 = vpop.permute.xlu0 %376
        %v379 = vmul.f32 %v373, %v377
        %381 = vrot.lane.b32.xlu0 %v374, 64
        %v382 = vpop.permute.xlu0 %381
        %v384 = vmul.f32 %v373, %v382
        %386 = vrot.lane.b32.xlu0 %v384, 32
        %v387 = vpop.permute.xlu0 %386
        %v389 = vadd.f32 %v379, %v387
        %v390 = vtanh.pop %v389
        %392 = vrot.lane.b32.xlu0 %v390, 64
        %v393 = vpop.permute.xlu0 %392
        %v395 = vmul.f32 %v373, %v393
        %v396 = vstv %s303
        %vm397 = vcmp.lt.s32.totalorder %v396, %v296
        %v398 = vsel %vm397, 1, 0
        %399 = vset.pattern.permute.xlu0 0
        %400 = vperm.xlu0 %399, %v398
        %v401 = vpop.permute.xlu0 %400
        %vm402 = vcmp.eq.s32.totalorder %v401, 1
        %v403 = vsel %vm402, %v395, 0.0
        %405 = vrot.lane.b32.xlu0 %v403, 32
        %v406 = vpop.permute.xlu0 %405
        %s408 = smul.u32 %s299, 8
        %s409 = scalar_lea.vmem %s271, %s408 [#allocation9]
        %410 = vst.msk [vmem:[%s409] sm:$0xff] %vm323, %v406
        %412 = vrot.lane.b32.xlu0 %v304, 96
        %v413 = vpop.permute.xlu0 %412
        %v415 = vsel %vm402, %v395, %v413
        %v416 = vsel %vm402, %v389, %v377
        %s417 = sadd.s32 %s299, %s298
        %s418 = sadd.s32 %s303, %s298
        %s419 = smul.addr %s417, 4
        %s420 = scalar_lea.vmem %s235, %s419 [#allocation4]
        %v421 = vld [vmem:[%s420] sm:$0xf]
        %v422 = vunpack.c.l.bf16 %v421
        %v423 = vpack.c.bf16 %v415, %v415
        %425 = vrot.lane.b32.xlu0 %v423, 32
        %v426 = vpop.permute.xlu0 %425
        %v428 = vsel %vm323, %v426, 0
        %430 = vmatprep.subr.bf16.mxu0 0
        %431 = vmatpush1.bf16.msra.mxu0 %v319
        %432 = vmatprep.subr.bf16.mxu0 0
        %433 = vmatpush1.bf16.msra.mxu0 %v320
        %434 = vmatprep.subr.bf16.mxu0 0
        %435 = vmatpush1.bf16.msra.mxu0 0
        %436 = vmatprep.subr.bf16.mxu0 0
        %437 = vmatpush1.bf16.msra.mxu0 0
        %438 = vmatprep.subr.bf16.mxu0 0
        %439 = vmatpush1.bf16.msra.mxu0 0
        %440 = vmatprep.subr.bf16.mxu0 0
        %441 = vmatpush1.bf16.msra.mxu0 0
        %442 = vmatprep.subr.bf16.mxu0 0
        %443 = vmatpush1.bf16.msra.mxu0 0
        %444 = vmatprep.subr.bf16.mxu0 0
        %445 = vmatpush1.bf16.msra.mxu0 0
        %446 = vmatprep.subr.bf16.mxu0 0
        %447 = vmatpush1.bf16.msra.mxu0 0
        %448 = vmatprep.subr.bf16.mxu0 0
        %449 = vmatpush1.bf16.msra.mxu0 0
        %450 = vmatprep.subr.bf16.mxu0 0
        %451 = vmatpush1.bf16.msra.mxu0 0
        %452 = vmatprep.subr.bf16.mxu0 0
        %453 = vmatpush1.bf16.msra.mxu0 0
        %454 = vmatprep.subr.bf16.mxu0 0
        %455 = vmatpush1.bf16.msra.mxu0 0
        %456 = vmatprep.subr.bf16.mxu0 0
        %457 = vmatpush1.bf16.msra.mxu0 0
        %458 = vmatprep.subr.bf16.mxu0 0
        %459 = vmatpush1.bf16.msra.mxu0 0
        %460 = vmatprep.subr.bf16.mxu0 0
        %461 = vmatpush1.bf16.msra.mxu0 0
        %462 = vmatprep.mubr.bf16.mxu0 0
        %463 = vmatmul.mubr.bf16.gmra.mrb[0].mxu0 %v428
        %v464 = vpop.f32.mrb[0].mxu0
        %v465 = vadd.f32 0.0, %v464
        %v466 = vpop.f32.mrb[0].mxu0
        %v467 = vpop.f32.mrb[0].mxu0
        %v468 = vpop.f32.mrb[0].mxu0
        %469 = vdwg.mxu0
        %v470 = vadd.f32 %v422, %v465
        %v471 = vxor.u32 %v470, 2147483648
        %v472 = vmul.f32 %v471, 1.442695
        %v473 = vpow.pop %v472
        %v474 = vadd.f32 %v473, 1.0
        %v475 = vrcp.pop %v474
        %v476 = vmul.f32 1.0, %v475
        %v477 = vtanh.pop %v470
        %v478 = vmul.f32 %v476, %v416
        %480 = vrot.lane.b32.xlu0 %v477, 64
        %v481 = vpop.permute.xlu0 %480
        %v483 = vmul.f32 %v476, %v481
        %485 = vrot.lane.b32.xlu0 %v483, 32
        %v486 = vpop.permute.xlu0 %485
        %v488 = vadd.f32 %v478, %v486
        %v489 = vtanh.pop %v488
        %491 = vrot.lane.b32.xlu0 %v489, 64
        %v492 = vpop.permute.xlu0 %491
        %v494 = vmul.f32 %v476, %v492
        %v495 = vstv %s418
        %vm496 = vcmp.lt.s32.totalorder %v495, %v296
        %v497 = vsel %vm496, 1, 0
        %498 = vset.pattern.permute.xlu0 0
        %499 = vperm.xlu0 %498, %v497
        %v500 = vpop.permute.xlu0 %499
        %vm501 = vcmp.eq.s32.totalorder %v500, 1
        %v502 = vsel %vm501, %v494, 0.0
        %504 = vrot.lane.b32.xlu0 %v502, 32
        %v505 = vpop.permute.xlu0 %504
        %s507 = smul.u32 %s417, 8
        %s508 = scalar_lea.vmem %s271, %s507 [#allocation9]
        %509 = vst.msk [vmem:[%s508] sm:$0xff] %vm323, %v505
        %v510 = vsel %vm501, %v494, %v415
        %v511 = vsel %vm501, %v488, %v416
        %s512 = smul.u32 %s298, 2
        %s513 = sadd.s32 %s299, %s512
        %s514 = sadd.s32 %s303, %s512
        %s515 = smul.addr %s513, 4
        %s516 = scalar_lea.vmem %s235, %s515 [#allocation4]
        %v517 = vld [vmem:[%s516] sm:$0xf]
        %v518 = vunpack.c.l.bf16 %v517
        %v519 = vpack.c.bf16 %v510, %v510
        %521 = vrot.lane.b32.xlu0 %v519, 32
        %v522 = vpop.permute.xlu0 %521
        %v524 = vsel %vm323, %v522, 0
        %526 = vmatprep.subr.bf16.mxu0 0
        %527 = vmatpush1.bf16.msra.mxu0 %v319
        %528 = vmatprep.subr.bf16.mxu0 0
        %529 = vmatpush1.bf16.msra.mxu0 %v320
        %530 = vmatprep.subr.bf16.mxu0 0
        %531 = vmatpush1.bf16.msra.mxu0 0
        %532 = vmatprep.subr.bf16.mxu0 0
        %533 = vmatpush1.bf16.msra.mxu0 0
        %534 = vmatprep.subr.bf16.mxu0 0
        %535 = vmatpush1.bf16.msra.mxu0 0
        %536 = vmatprep.subr.bf16.mxu0 0
        %537 = vmatpush1.bf16.msra.mxu0 0
        %538 = vmatprep.subr.bf16.mxu0 0
        %539 = vmatpush1.bf16.msra.mxu0 0
        %540 = vmatprep.subr.bf16.mxu0 0
        %541 = vmatpush1.bf16.msra.mxu0 0
        %542 = vmatprep.subr.bf16.mxu0 0
        %543 = vmatpush1.bf16.msra.mxu0 0
        %544 = vmatprep.subr.bf16.mxu0 0
        %545 = vmatpush1.bf16.msra.mxu0 0
        %546 = vmatprep.subr.bf16.mxu0 0
        %547 = vmatpush1.bf16.msra.mxu0 0
        %548 = vmatprep.subr.bf16.mxu0 0
        %549 = vmatpush1.bf16.msra.mxu0 0
        %550 = vmatprep.subr.bf16.mxu0 0
        %551 = vmatpush1.bf16.msra.mxu0 0
        %552 = vmatprep.subr.bf16.mxu0 0
        %553 = vmatpush1.bf16.msra.mxu0 0
        %554 = vmatprep.subr.bf16.mxu0 0
        %555 = vmatpush1.bf16.msra.mxu0 0
        %556 = vmatprep.subr.bf16.mxu0 0
        %557 = vmatpush1.bf16.msra.mxu0 0
        %558 = vmatprep.mubr.bf16.mxu0 0
        %559 = vmatmul.mubr.bf16.gmra.mrb[0].mxu0 %v524
        %v560 = vpop.f32.mrb[0].mxu0
        %v561 = vadd.f32 0.0, %v560
        %v562 = vpop.f32.mrb[0].mxu0
        %v563 = vpop.f32.mrb[0].mxu0
        %v564 = vpop.f32.mrb[0].mxu0
        %565 = vdwg.mxu0
        %v566 = vadd.f32 %v518, %v561
        %v567 = vxor.u32 %v566, 2147483648
        %v568 = vmul.f32 %v567, 1.442695
        %v569 = vpow.pop %v568
        %v570 = vadd.f32 %v569, 1.0
        %v571 = vrcp.pop %v570
        %v572 = vmul.f32 1.0, %v571
        %v573 = vtanh.pop %v566
        %v574 = vmul.f32 %v572, %v511
        %576 = vrot.lane.b32.xlu0 %v573, 64
        %v577 = vpop.permute.xlu0 %576
        %v579 = vmul.f32 %v572, %v577
        %581 = vrot.lane.b32.xlu0 %v579, 32
        %v582 = vpop.permute.xlu0 %581
        %v584 = vadd.f32 %v574, %v582
        %v585 = vtanh.pop %v584
        %587 = vrot.lane.b32.xlu0 %v585, 64
        %v588 = vpop.permute.xlu0 %587
        %v590 = vmul.f32 %v572, %v588
        %v591 = vstv %s514
        %vm592 = vcmp.lt.s32.totalorder %v591, %v296
        %v593 = vsel %vm592, 1, 0
        %594 = vset.pattern.permute.xlu0 0
        %595 = vperm.xlu0 %594, %v593
        %v596 = vpop.permute.xlu0 %595
        %vm597 = vcmp.eq.s32.totalorder %v596, 1
        %v598 = vsel %vm597, %v590, 0.0
        %600 = vrot.lane.b32.xlu0 %v598, 32
        %v601 = vpop.permute.xlu0 %600
        %s603 = smul.u32 %s513, 8
        %s604 = scalar_lea.vmem %s271, %s603 [#allocation9]
        %605 = vst.msk [vmem:[%s604] sm:$0xff] %vm323, %v601
        %v606 = vsel %vm597, %v590, %v510
        %v607 = vsel %vm597, %v584, %v511
        %s608 = smul.u32 %s298, 3
        %s609 = sadd.s32 %s299, %s608
        %s610 = sadd.s32 %s303, %s608
        %s611 = smul.addr %s609, 4
        %s612 = scalar_lea.vmem %s235, %s611 [#allocation4]
        %v613 = vld [vmem:[%s612] sm:$0xf]
        %v614 = vunpack.c.l.bf16 %v613
        %v615 = vpack.c.bf16 %v606, %v606
        %617 = vrot.lane.b32.xlu0 %v615, 32
        %v618 = vpop.permute.xlu0 %617
        %v620 = vsel %vm323, %v618, 0
        %622 = vmatprep.subr.bf16.mxu0 0
        %623 = vmatpush1.bf16.msra.mxu0 %v319
        %624 = vmatprep.subr.bf16.mxu0 0
        %625 = vmatpush1.bf16.msra.mxu0 %v320
        %626 = vmatprep.subr.bf16.mxu0 0
        %627 = vmatpush1.bf16.msra.mxu0 0
        %628 = vmatprep.subr.bf16.mxu0 0
        %629 = vmatpush1.bf16.msra.mxu0 0
        %630 = vmatprep.subr.bf16.mxu0 0
        %631 = vmatpush1.bf16.msra.mxu0 0
        %632 = vmatprep.subr.bf16.mxu0 0
        %633 = vmatpush1.bf16.msra.mxu0 0
        %634 = vmatprep.subr.bf16.mxu0 0
        %635 = vmatpush1.bf16.msra.mxu0 0
        %636 = vmatprep.subr.bf16.mxu0 0
        %637 = vmatpush1.bf16.msra.mxu0 0
        %638 = vmatprep.subr.bf16.mxu0 0
        %639 = vmatpush1.bf16.msra.mxu0 0
        %640 = vmatprep.subr.bf16.mxu0 0
        %641 = vmatpush1.bf16.msra.mxu0 0
        %642 = vmatprep.subr.bf16.mxu0 0
        %643 = vmatpush1.bf16.msra.mxu0 0
        %644 = vmatprep.subr.bf16.mxu0 0
        %645 = vmatpush1.bf16.msra.mxu0 0
        %646 = vmatprep.subr.bf16.mxu0 0
        %647 = vmatpush1.bf16.msra.mxu0 0
        %648 = vmatprep.subr.bf16.mxu0 0
        %649 = vmatpush1.bf16.msra.mxu0 0
        %650 = vmatprep.subr.bf16.mxu0 0
        %651 = vmatpush1.bf16.msra.mxu0 0
        %652 = vmatprep.subr.bf16.mxu0 0
        %653 = vmatpush1.bf16.msra.mxu0 0
        %654 = vmatprep.mubr.bf16.mxu0 0
        %655 = vmatmul.mubr.bf16.gmra.mrb[0].mxu0 %v620
        %v656 = vpop.f32.mrb[0].mxu0
        %v657 = vadd.f32 0.0, %v656
        %v658 = vpop.f32.mrb[0].mxu0
        %v659 = vpop.f32.mrb[0].mxu0
        %v660 = vpop.f32.mrb[0].mxu0
        %661 = vdwg.mxu0
        %v662 = vadd.f32 %v614, %v657
        %v663 = vxor.u32 %v662, 2147483648
        %v664 = vmul.f32 %v663, 1.442695
        %v665 = vpow.pop %v664
        %v666 = vadd.f32 %v665, 1.0
        %v667 = vrcp.pop %v666
        %v668 = vmul.f32 1.0, %v667
        %v669 = vtanh.pop %v662
        %v670 = vmul.f32 %v668, %v607
        %672 = vrot.lane.b32.xlu0 %v669, 64
        %v673 = vpop.permute.xlu0 %672
        %v675 = vmul.f32 %v668, %v673
        %677 = vrot.lane.b32.xlu0 %v675, 32
        %v678 = vpop.permute.xlu0 %677
        %v680 = vadd.f32 %v670, %v678
        %v681 = vtanh.pop %v680
        %683 = vrot.lane.b32.xlu0 %v681, 64
        %v684 = vpop.permute.xlu0 %683
        %v686 = vmul.f32 %v668, %v684
        %v687 = vstv %s610
        %vm688 = vcmp.lt.s32.totalorder %v687, %v296
        %v689 = vsel %vm688, 1, 0
        %690 = vset.pattern.permute.xlu0 0
        %691 = vperm.xlu0 %690, %v689
        %v692 = vpop.permute.xlu0 %691
        %vm693 = vcmp.eq.s32.totalorder %v692, 1
        %v694 = vsel %vm693, %v686, 0.0
        %696 = vrot.lane.b32.xlu0 %v694, 32
        %v697 = vpop.permute.xlu0 %696
        %s699 = smul.u32 %s609, 8
        %s700 = scalar_lea.vmem %s271, %s699 [#allocation9]
        %701 = vst.msk [vmem:[%s700] sm:$0xff] %vm323, %v697
        %v702 = vsel %vm693, %v686, %v606
        %v703 = vsel %vm693, %v680, %v607
        %s704 = smul.u32 %s298, 4
        %s705 = sadd.s32 %s299, %s704
        %s706 = sadd.s32 %s303, %s704
        %s707 = smul.addr %s705, 4
        %s708 = scalar_lea.vmem %s235, %s707 [#allocation4]
        %v709 = vld [vmem:[%s708] sm:$0xf]
        %v710 = vunpack.c.l.bf16 %v709
        %v711 = vpack.c.bf16 %v702, %v702
        %713 = vrot.lane.b32.xlu0 %v711, 32
        %v714 = vpop.permute.xlu0 %713
        %v716 = vsel %vm323, %v714, 0
        %718 = vmatprep.subr.bf16.mxu0 0
        %719 = vmatpush1.bf16.msra.mxu0 %v319
        %720 = vmatprep.subr.bf16.mxu0 0
        %721 = vmatpush1.bf16.msra.mxu0 %v320
        %722 = vmatprep.subr.bf16.mxu0 0
        %723 = vmatpush1.bf16.msra.mxu0 0
        %724 = vmatprep.subr.bf16.mxu0 0
        %725 = vmatpush1.bf16.msra.mxu0 0
        %726 = vmatprep.subr.bf16.mxu0 0
        %727 = vmatpush1.bf16.msra.mxu0 0
        %728 = vmatprep.subr.bf16.mxu0 0
        %729 = vmatpush1.bf16.msra.mxu0 0
        %730 = vmatprep.subr.bf16.mxu0 0
        %731 = vmatpush1.bf16.msra.mxu0 0
        %732 = vmatprep.subr.bf16.mxu0 0
        %733 = vmatpush1.bf16.msra.mxu0 0
        %734 = vmatprep.subr.bf16.mxu0 0
        %735 = vmatpush1.bf16.msra.mxu0 0
        %736 = vmatprep.subr.bf16.mxu0 0
        %737 = vmatpush1.bf16.msra.mxu0 0
        %738 = vmatprep.subr.bf16.mxu0 0
        %739 = vmatpush1.bf16.msra.mxu0 0
        %740 = vmatprep.subr.bf16.mxu0 0
        %741 = vmatpush1.bf16.msra.mxu0 0
        %742 = vmatprep.subr.bf16.mxu0 0
        %743 = vmatpush1.bf16.msra.mxu0 0
        %744 = vmatprep.subr.bf16.mxu0 0
        %745 = vmatpush1.bf16.msra.mxu0 0
        %746 = vmatprep.subr.bf16.mxu0 0
        %747 = vmatpush1.bf16.msra.mxu0 0
        %748 = vmatprep.subr.bf16.mxu0 0
        %749 = vmatpush1.bf16.msra.mxu0 0
        %750 = vmatprep.mubr.bf16.mxu0 0
        %751 = vmatmul.mubr.bf16.gmra.mrb[0].mxu0 %v716
        %v752 = vpop.f32.mrb[0].mxu0
        %v753 = vadd.f32 0.0, %v752
        %v754 = vpop.f32.mrb[0].mxu0
        %v755 = vpop.f32.mrb[0].mxu0
        %v756 = vpop.f32.mrb[0].mxu0
        %757 = vdwg.mxu0
        %v758 = vadd.f32 %v710, %v753
        %v759 = vxor.u32 %v758, 2147483648
        %v760 = vmul.f32 %v759, 1.442695
        %v761 = vpow.pop %v760
        %v762 = vadd.f32 %v761, 1.0
        %v763 = vrcp.pop %v762
        %v764 = vmul.f32 1.0, %v763
        %v765 = vtanh.pop %v758
        %v766 = vmul.f32 %v764, %v703
        %768 = vrot.lane.b32.xlu0 %v765, 64
        %v769 = vpop.permute.xlu0 %768
        %v771 = vmul.f32 %v764, %v769
        %773 = vrot.lane.b32.xlu0 %v771, 32
        %v774 = vpop.permute.xlu0 %773
        %v776 = vadd.f32 %v766, %v774
        %v777 = vtanh.pop %v776
        %779 = vrot.lane.b32.xlu0 %v777, 64
        %v780 = vpop.permute.xlu0 %779
        %v782 = vmul.f32 %v764, %v780
        %v783 = vstv %s706
        %vm784 = vcmp.lt.s32.totalorder %v783, %v296
        %v785 = vsel %vm784, 1, 0
        %786 = vset.pattern.permute.xlu0 0
        %787 = vperm.xlu0 %786, %v785
        %v788 = vpop.permute.xlu0 %787
        %vm789 = vcmp.eq.s32.totalorder %v788, 1
        %v790 = vsel %vm789, %v782, 0.0
        %792 = vrot.lane.b32.xlu0 %v790, 32
        %v793 = vpop.permute.xlu0 %792
        %s795 = smul.u32 %s705, 8
        %s796 = scalar_lea.vmem %s271, %s795 [#allocation9]
        %797 = vst.msk [vmem:[%s796] sm:$0xff] %vm323, %v793
        %v798 = vsel %vm789, %v782, %v702
        %v799 = vsel %vm789, %v776, %v703
        %s800 = smul.u32 %s298, 5
        %s801 = sadd.s32 %s299, %s800
        %s802 = sadd.s32 %s303, %s800
        %s803 = smul.addr %s801, 4
        %s804 = scalar_lea.vmem %s235, %s803 [#allocation4]
        %v805 = vld [vmem:[%s804] sm:$0xf]
        %v806 = vunpack.c.l.bf16 %v805
        %v807 = vpack.c.bf16 %v798, %v798
        %809 = vrot.lane.b32.xlu0 %v807, 32
        %v810 = vpop.permute.xlu0 %809
        %v812 = vsel %vm323, %v810, 0
        %814 = vmatprep.subr.bf16.mxu0 0
        %815 = vmatpush1.bf16.msra.mxu0 %v319
        %816 = vmatprep.subr.bf16.mxu0 0
        %817 = vmatpush1.bf16.msra.mxu0 %v320
        %818 = vmatprep.subr.bf16.mxu0 0
        %819 = vmatpush1.bf16.msra.mxu0 0
        %820 = vmatprep.subr.bf16.mxu0 0
        %821 = vmatpush1.bf16.msra.mxu0 0
        %822 = vmatprep.subr.bf16.mxu0 0
        %823 = vmatpush1.bf16.msra.mxu0 0
        %824 = vmatprep.subr.bf16.mxu0 0
        %825 = vmatpush1.bf16.msra.mxu0 0
        %826 = vmatprep.subr.bf16.mxu0 0
        %827 = vmatpush1.bf16.msra.mxu0 0
        %828 = vmatprep.subr.bf16.mxu0 0
        %829 = vmatpush1.bf16.msra.mxu0 0
        %830 = vmatprep.subr.bf16.mxu0 0
        %831 = vmatpush1.bf16.msra.mxu0 0
        %832 = vmatprep.subr.bf16.mxu0 0
        %833 = vmatpush1.bf16.msra.mxu0 0
        %834 = vmatprep.subr.bf16.mxu0 0
        %835 = vmatpush1.bf16.msra.mxu0 0
        %836 = vmatprep.subr.bf16.mxu0 0
        %837 = vmatpush1.bf16.msra.mxu0 0
        %838 = vmatprep.subr.bf16.mxu0 0
        %839 = vmatpush1.bf16.msra.mxu0 0
        %840 = vmatprep.subr.bf16.mxu0 0
        %841 = vmatpush1.bf16.msra.mxu0 0
        %842 = vmatprep.subr.bf16.mxu0 0
        %843 = vmatpush1.bf16.msra.mxu0 0
        %844 = vmatprep.subr.bf16.mxu0 0
        %845 = vmatpush1.bf16.msra.mxu0 0
        %846 = vmatprep.mubr.bf16.mxu0 0
        %847 = vmatmul.mubr.bf16.gmra.mrb[0].mxu0 %v812
        %v848 = vpop.f32.mrb[0].mxu0
        %v849 = vadd.f32 0.0, %v848
        %v850 = vpop.f32.mrb[0].mxu0
        %v851 = vpop.f32.mrb[0].mxu0
        %v852 = vpop.f32.mrb[0].mxu0
        %853 = vdwg.mxu0
        %v854 = vadd.f32 %v806, %v849
        %v855 = vxor.u32 %v854, 2147483648
        %v856 = vmul.f32 %v855, 1.442695
        %v857 = vpow.pop %v856
        %v858 = vadd.f32 %v857, 1.0
        %v859 = vrcp.pop %v858
        %v860 = vmul.f32 1.0, %v859
        %v861 = vtanh.pop %v854
        %v862 = vmul.f32 %v860, %v799
        %864 = vrot.lane.b32.xlu0 %v861, 64
        %v865 = vpop.permute.xlu0 %864
        %v867 = vmul.f32 %v860, %v865
        %869 = vrot.lane.b32.xlu0 %v867, 32
        %v870 = vpop.permute.xlu0 %869
        %v872 = vadd.f32 %v862, %v870
        %v873 = vtanh.pop %v872
        %875 = vrot.lane.b32.xlu0 %v873, 64
        %v876 = vpop.permute.xlu0 %875
        %v878 = vmul.f32 %v860, %v876
        %v879 = vstv %s802
        %vm880 = vcmp.lt.s32.totalorder %v879, %v296
        %v881 = vsel %vm880, 1, 0
        %882 = vset.pattern.permute.xlu0 0
        %883 = vperm.xlu0 %882, %v881
        %v884 = vpop.permute.xlu0 %883
        %vm885 = vcmp.eq.s32.totalorder %v884, 1
        %v886 = vsel %vm885, %v878, 0.0
        %888 = vrot.lane.b32.xlu0 %v886, 32
        %v889 = vpop.permute.xlu0 %888
        %s891 = smul.u32 %s801, 8
        %s892 = scalar_lea.vmem %s271, %s891 [#allocation9]
        %893 = vst.msk [vmem:[%s892] sm:$0xff] %vm323, %v889
        %v894 = vsel %vm885, %v878, %v798
        %v895 = vsel %vm885, %v872, %v799
        %s896 = smul.u32 %s298, 6
        %s897 = sadd.s32 %s299, %s896
        %s898 = sadd.s32 %s303, %s896
        %s899 = smul.addr %s897, 4
        %s900 = scalar_lea.vmem %s235, %s899 [#allocation4]
        %v901 = vld [vmem:[%s900] sm:$0xf]
        %v902 = vunpack.c.l.bf16 %v901
        %v903 = vpack.c.bf16 %v894, %v894
        %905 = vrot.lane.b32.xlu0 %v903, 32
        %v906 = vpop.permute.xlu0 %905
        %v908 = vsel %vm323, %v906, 0
        %910 = vmatprep.subr.bf16.mxu0 0
        %911 = vmatpush1.bf16.msra.mxu0 %v319
        %912 = vmatprep.subr.bf16.mxu0 0
        %913 = vmatpush1.bf16.msra.mxu0 %v320
        %914 = vmatprep.subr.bf16.mxu0 0
        %915 = vmatpush1.bf16.msra.mxu0 0
        %916 = vmatprep.subr.bf16.mxu0 0
        %917 = vmatpush1.bf16.msra.mxu0 0
        %918 = vmatprep.subr.bf16.mxu0 0
        %919 = vmatpush1.bf16.msra.mxu0 0
        %920 = vmatprep.subr.bf16.mxu0 0
        %921 = vmatpush1.bf16.msra.mxu0 0
        %922 = vmatprep.subr.bf16.mxu0 0
        %923 = vmatpush1.bf16.msra.mxu0 0
        %924 = vmatprep.subr.bf16.mxu0 0
        %925 = vmatpush1.bf16.msra.mxu0 0
        %926 = vmatprep.subr.bf16.mxu0 0
        %927 = vmatpush1.bf16.msra.mxu0 0
        %928 = vmatprep.subr.bf16.mxu0 0
        %929 = vmatpush1.bf16.msra.mxu0 0
        %930 = vmatprep.subr.bf16.mxu0 0
        %931 = vmatpush1.bf16.msra.mxu0 0
        %932 = vmatprep.subr.bf16.mxu0 0
        %933 = vmatpush1.bf16.msra.mxu0 0
        %934 = vmatprep.subr.bf16.mxu0 0
        %935 = vmatpush1.bf16.msra.mxu0 0
        %936 = vmatprep.subr.bf16.mxu0 0
        %937 = vmatpush1.bf16.msra.mxu0 0
        %938 = vmatprep.subr.bf16.mxu0 0
        %939 = vmatpush1.bf16.msra.mxu0 0
        %940 = vmatprep.subr.bf16.mxu0 0
        %941 = vmatpush1.bf16.msra.mxu0 0
        %942 = vmatprep.mubr.bf16.mxu0 0
        %943 = vmatmul.mubr.bf16.gmra.mrb[0].mxu0 %v908
        %v944 = vpop.f32.mrb[0].mxu0
        %v945 = vadd.f32 0.0, %v944
        %v946 = vpop.f32.mrb[0].mxu0
        %v947 = vpop.f32.mrb[0].mxu0
        %v948 = vpop.f32.mrb[0].mxu0
        %949 = vdwg.mxu0
        %v950 = vadd.f32 %v902, %v945
        %v951 = vxor.u32 %v950, 2147483648
        %v952 = vmul.f32 %v951, 1.442695
        %v953 = vpow.pop %v952
        %v954 = vadd.f32 %v953, 1.0
        %v955 = vrcp.pop %v954
        %v956 = vmul.f32 1.0, %v955
        %v957 = vtanh.pop %v950
        %v958 = vmul.f32 %v956, %v895
        %960 = vrot.lane.b32.xlu0 %v957, 64
        %v961 = vpop.permute.xlu0 %960
        %v963 = vmul.f32 %v956, %v961
        %965 = vrot.lane.b32.xlu0 %v963, 32
        %v966 = vpop.permute.xlu0 %965
        %v968 = vadd.f32 %v958, %v966
        %v969 = vtanh.pop %v968
        %971 = vrot.lane.b32.xlu0 %v969, 64
        %v972 = vpop.permute.xlu0 %971
        %v974 = vmul.f32 %v956, %v972
        %v975 = vstv %s898
        %vm976 = vcmp.lt.s32.totalorder %v975, %v296
        %v977 = vsel %vm976, 1, 0
        %978 = vset.pattern.permute.xlu0 0
        %979 = vperm.xlu0 %978, %v977
        %v980 = vpop.permute.xlu0 %979
        %vm981 = vcmp.eq.s32.totalorder %v980, 1
        %v982 = vsel %vm981, %v974, 0.0
        %984 = vrot.lane.b32.xlu0 %v982, 32
        %v985 = vpop.permute.xlu0 %984
        %s987 = smul.u32 %s897, 8
        %s988 = scalar_lea.vmem %s271, %s987 [#allocation9]
        %989 = vst.msk [vmem:[%s988] sm:$0xff] %vm323, %v985
        %v990 = vsel %vm981, %v974, %v894
        %v991 = vsel %vm981, %v968, %v895
        %s992 = smul.u32 %s298, 7
        %s993 = sadd.s32 %s299, %s992
        %s994 = sadd.s32 %s303, %s992
        %s995 = smul.addr %s993, 4
        %s996 = scalar_lea.vmem %s235, %s995 [#allocation4]
        %v997 = vld [vmem:[%s996] sm:$0xf]
        %v998 = vunpack.c.l.bf16 %v997
        %v999 = vpack.c.bf16 %v990, %v990
        %1001 = vrot.lane.b32.xlu0 %v999, 32
        %v1002 = vpop.permute.xlu0 %1001
        %v1004 = vsel %vm323, %v1002, 0
        %1006 = vmatprep.subr.bf16.mxu0 0
        %1007 = vmatpush1.bf16.msra.mxu0 %v319
        %1008 = vmatprep.subr.bf16.mxu0 0
        %1009 = vmatpush1.bf16.msra.mxu0 %v320
        %1010 = vmatprep.subr.bf16.mxu0 0
        %1011 = vmatpush1.bf16.msra.mxu0 0
        %1012 = vmatprep.subr.bf16.mxu0 0
        %1013 = vmatpush1.bf16.msra.mxu0 0
        %1014 = vmatprep.subr.bf16.mxu0 0
        %1015 = vmatpush1.bf16.msra.mxu0 0
        %1016 = vmatprep.subr.bf16.mxu0 0
        %1017 = vmatpush1.bf16.msra.mxu0 0
        %1018 = vmatprep.subr.bf16.mxu0 0
        %1019 = vmatpush1.bf16.msra.mxu0 0
        %1020 = vmatprep.subr.bf16.mxu0 0
        %1021 = vmatpush1.bf16.msra.mxu0 0
        %1022 = vmatprep.subr.bf16.mxu0 0
        %1023 = vmatpush1.bf16.msra.mxu0 0
        %1024 = vmatprep.subr.bf16.mxu0 0
        %1025 = vmatpush1.bf16.msra.mxu0 0
        %1026 = vmatprep.subr.bf16.mxu0 0
        %1027 = vmatpush1.bf16.msra.mxu0 0
        %1028 = vmatprep.subr.bf16.mxu0 0
        %1029 = vmatpush1.bf16.msra.mxu0 0
        %1030 = vmatprep.subr.bf16.mxu0 0
        %1031 = vmatpush1.bf16.msra.mxu0 0
        %1032 = vmatprep.subr.bf16.mxu0 0
        %1033 = vmatpush1.bf16.msra.mxu0 0
        %1034 = vmatprep.subr.bf16.mxu0 0
        %1035 = vmatpush1.bf16.msra.mxu0 0
        %1036 = vmatprep.subr.bf16.mxu0 0
        %1037 = vmatpush1.bf16.msra.mxu0 0
        %1038 = vmatprep.mubr.bf16.mxu0 0
        %1039 = vmatmul.mubr.bf16.gmra.mrb[0].mxu0 %v1004
        %v1040 = vpop.f32.mrb[0].mxu0
        %v1041 = vadd.f32 0.0, %v1040
        %v1042 = vpop.f32.mrb[0].mxu0
        %v1043 = vpop.f32.mrb[0].mxu0
        %v1044 = vpop.f32.mrb[0].mxu0
        %1045 = vdwg.mxu0
        %v1046 = vadd.f32 %v998, %v1041
        %v1047 = vxor.u32 %v1046, 2147483648
        %v1048 = vmul.f32 %v1047, 1.442695
        %v1049 = vpow.pop %v1048
        %v1050 = vadd.f32 %v1049, 1.0
        %v1051 = vrcp.pop %v1050
        %v1052 = vmul.f32 1.0, %v1051
        %v1053 = vtanh.pop %v1046
        %v1054 = vmul.f32 %v1052, %v991
        %1056 = vrot.lane.b32.xlu0 %v1053, 64
        %v1057 = vpop.permute.xlu0 %1056
        %v1059 = vmul.f32 %v1052, %v1057
        %1061 = vrot.lane.b32.xlu0 %v1059, 32
        %v1062 = vpop.permute.xlu0 %1061
        %v1064 = vadd.f32 %v1054, %v1062
        %v1065 = vtanh.pop %v1064
        %1067 = vrot.lane.b32.xlu0 %v1065, 64
        %v1068 = vpop.permute.xlu0 %1067
        %v1070 = vmul.f32 %v1052, %v1068
        %v1071 = vstv %s994
        %vm1072 = vcmp.lt.s32.totalorder %v1071, %v296
        %v1073 = vsel %vm1072, 1, 0
        %1074 = vset.pattern.permute.xlu0 0
        %1075 = vperm.xlu0 %1074, %v1073
        %v1076 = vpop.permute.xlu0 %1075
        %vm1077 = vcmp.eq.s32.totalorder %v1076, 1
        %v1078 = vsel %vm1077, %v1070, 0.0
        %1080 = vrot.lane.b32.xlu0 %v1078, 32
        %v1081 = vpop.permute.xlu0 %1080
        %s1083 = smul.u32 %s993, 8
        %s1084 = scalar_lea.vmem %s271, %s1083 [#allocation9]
        %1085 = vst.msk [vmem:[%s1084] sm:$0xff] %vm323, %v1081
        %v1086 = vsel %vm1077, %v1070, %v990
        %v1087 = vsel %vm1077, %v1064, %v991
        %1089 = vrot.lane.b32.xlu0 %v1086, 32
        %v1090 = vpop.permute.xlu0 %1089
        %1092 = vst.msk [vmem:[#allocation2] sm:$0xff] %vm323, %v1090
        %1094 = vrot.lane.b32.xlu0 %v1087, 96
        %v1095 = vpop.permute.xlu0 %1094
        %1097 = vst.msk [vmem:[#allocation3] sm:$0xff] %vm323, %v1095
        %s1098 = sand.u32 %s140, 1
        %s1099 = scalar_lea.sflag [#allocation6], %s1098
        %s1100 = sand.u32 %s140, 1
        %s1101 = smul.addr %s1100, 64
        %s1102 = scalar_lea.vmem [#allocation9], %s1101
        // Predicated region
        $region45: #{tpu_custom_call.1} parent=31 // pred_check
          %p1103 = pneg %p150
        $region46: #{tpu_custom_call.1} parent=31 // pred_check_branch
          %1105 = sbr.rel (%p1103) target = $region48
        $region47: #{tpu_custom_call.1} parent=31 // pred_region
          %s1106 = ssub.s32 1, %s27
          %s1107 = smul.u32 %s1106, %s28
          %s1108 = ssub.s32 1, %s28
          %s1109 = smul.u32 %s27, %s1108
          %s1110 = sadd.s32 %s1107, %s1109
          %s1111 = smul.u32 8, %s1110
          %s1113 = ssub.s32 1024, 1024
          %1114 = vsyncadd %s1099, %s1113
          %s1115 = smul.addr %s27, 16
          %s1116 = sadd.s32 %s1111, %s1115
          %s1117 = smul.addr %s1116, 128
          %s1118 = scalar_lea.hbm %s3, %s1117
          %s1119 = sshll.u32 %s1102, 4
          %s1120 = int_to_ptr.vmem [resolvable:$true] %s1119
          %1125 = dma.vmem_to_hbm [thread:$0]  %s1120, 1024, %s1118, %s1099, 128, 128, 8
        $region48: #{tpu_custom_call.1} parent=31 // pred_fallthru
          _
      $region32: #{tpu_custom_call.1} parent=5 // pred_fallthru
        _
      %p1126 = scmp.le.s32.totalorder 2, %s18
      // Predicated region
      $region49: #{tpu_custom_call.1} parent=5 // pred_check
        %p1127 = pneg %p1126
      $region50: #{tpu_custom_call.1} parent=5 // pred_check_branch
        %1129 = sbr.rel (%p1127) target = $region52
      $region51: #{tpu_custom_call.1} parent=5 // pred_region
        %s1130 = ssub.s32 %s18, 2
        // Predicated region
        $region53: #{tpu_custom_call.1} parent=51 // pred_check
          %p1131 = pneg %p156
        $region54: #{tpu_custom_call.1} parent=51 // pred_check_branch
          %1133 = sbr.rel (%p1131) target = $region56
        $region55: #{tpu_custom_call.1} parent=51 // pred_region
          %s1134 = sand.u32 %s141, 1
          %s1135 = scalar_lea.sflag [#allocation6], %s1134
          %s1136 = sand.u32 %s141, 1
          %s1137 = smul.addr %s1136, 64
          %s1138 = scalar_lea.vmem [#allocation9], %s1137
          %1139 = dma.done %s1135, 1024
        $region56: #{tpu_custom_call.1} parent=51 // pred_fallthru
          _
      $region52: #{tpu_custom_call.1} parent=5 // pred_fallthru
        _
    $region6: #{tpu_custom_call.1} parent=1 // loop_footer
      %s22 = sadd.s32 1, %s18
    $region7: #{tpu_custom_call.1} parent=1 // loop_footer_branch
      %17 = sbr.rel target = $region3
    $region8: #{tpu_custom_call.1} parent=1 // loop_exit
      _
    %1140 = vsyncpa [#allocation5], 1
    %s1141 = scalar_lea.sflag [#allocation5], 1
    %1142 = vsyncpa %s1141, 1
    %1143 = vsyncpa [#allocation8], 1
    %s1144 = scalar_lea.sflag [#allocation8], 1
    %1145 = vsyncpa %s1144, 1
    %1146 = vsyncpa [#allocation6], 1
    %s1147 = scalar_lea.sflag [#allocation6], 1
    %1148 = vsyncpa %s1147, 1

</llo_original>
